<compile_context>
chip_gen: v7x
topology: tpu7x:2x2x1
jax: 0.10.0
libtpu: 0.0.40
codegen_flags: <defaults>
</compile_context>

<pallas_src>
import functools

import numpy as np
import jax
import jax.numpy as jnp
from jax.experimental import pallas as pl
from jax.experimental.pallas import tpu as pltpu

LANES = 128
C_STEM, C_MID, C_FEAT = 32, 16, 64
KH = KW = 3
N_TAPS = KH * KW                   # 9 taps of the 3x3 conv
A_LANES = N_TAPS * C_MID           # 144: replicated reduce copies occupy lanes [0,144)
SC_LO = A_LANES                    # 144: shortcut occupies lanes [144, 208)
C_OFF = SC_LO - LANES              # 16: channel offset inside the scratch's second
                                   #     128-lane column == offset of the output channels


def _round_up(x, m):
    return ((x + m - 1) // m) * m


# ----------------------------------------------------------------------------
# Fused Pallas kernel
# ----------------------------------------------------------------------------
def _fused_kernel(xc_ref, ws_ref, bs_ref, wm_ref, bm_ref, wbb_ref, bbb_ref,
                  wbc_ref, bbc_ref, vmask_ref, pool_ref, v_ref, vg_ref, a_scr,
                  *, w_out, m_pad, pad_rows):
    f32, bf16 = jnp.float32, jnp.bfloat16

    # --- 1) stem 3x3/s2 conv as an im2col matmul (patches built outside). -----
    h = jnp.dot(xc_ref[...], ws_ref[...], preferred_element_type=f32) + bs_ref[...]
    h = jnp.maximum(h, 0.0)                                     # (m_pad, 128) f32

    # --- 2) merged 1x1 convs sharing LHS h, single N=256 MXU column pass: -----
    #   lanes   0..143 : 9 replicated copies of the bottleneck reduce (32->16)
    #   lanes 144..207 : 1x1 shortcut (32->64) -- must stay PRE-relu
    m = jnp.dot(h.astype(bf16), wm_ref[...], preferred_element_type=f32) + bm_ref[...]
    lane = jax.lax.broadcasted_iota(jnp.int32, (1, 2 * LANES), 1)
    keep = (lane >= A_LANES).astype(f32)        # 1.0 on shortcut / zero lanes
    a_sel = jnp.maximum(m, m * keep)            # relu on lanes <144, identity elsewhere

    # Park a_sel in VMEM: the tap loop reads row-shifted windows of it and step 4
    # reloads the (pre-relu) shortcut slab from its second 128-lane column, so
    # neither the 256-lane merge result nor the shortcut stays live in vregs
    # across the loop.  Only the two halo bands are zeroed.
    zero_halo = jnp.zeros((pad_rows, 2 * LANES), f32)
    a_scr[pl.ds(0, pad_rows), :] = zero_halo                    # top halo only
    a_scr[pl.ds(pad_rows + m_pad, pad_rows), :] = zero_halo     # bottom halo only
    a_scr[pl.ds(pad_rows, m_pad), :] = a_sel

    # --- 3) 3x3/s1 conv: in-VMEM im2col via 9 row-shifted reads. --------------
    # Per tap: constant 16-lane band select (broadcast multiply).  All boundary /
    # padded-row validity is one host-precomputed mask multiply after the loop.
    cols = jnp.zeros((m_pad, 2 * LANES), f32)
    for ki in range(KH):
        for kj in range(KW):
            t = ki * KW + kj
            shift = (ki - 1) * w_out + (kj - 1)
            tap = a_scr[pl.ds(pad_rows + shift, m_pad), :]      # rows r -> a_sel[r+shift]
            band = ((lane >= C_MID * t) & (lane < C_MID * (t + 1))).astype(f32)
            cols = cols + tap * band
    cols = cols * vmask_ref[...].astype(f32)
    bmid = jnp.dot(cols.astype(bf16), wbb_ref[...], preferred_element_type=f32)
    bmid = jnp.maximum(bmid + bbb_ref[...], 0.0)                # (m_pad, 128)

    # --- 4) bottleneck tail: 1x1 expand + residual + relu -> feature map A. ---
    # The shortcut sits at lanes 144..207 of the scratch == lanes 16..79 of its
    # second (aligned) 128-lane column; w_bc / b_bc are packed to the same offset.
    shortcut = a_scr[pl.ds(pad_rows, m_pad), pl.ds(LANES, LANES)]
    feat = jnp.dot(bmid.astype(bf16), wbc_ref[...], preferred_element_type=f32)
    feat = jnp.maximum(feat + bbc_ref[...] + shortcut, 0.0)     # channels at lanes 16..79
    v_ref[...] = feat                                           # full lane-dense store

    # --- 5) AvgPool2d(7x7): mean over each image's 49 rows as one tiny matmul.
    vg_ref[...] = jnp.dot(pool_ref[...], feat, preferred_element_type=f32)


# ----------------------------------------------------------------------------
# Plain-JAX glue: im2col patch extraction (stem input formatting + reference)
# ----------------------------------------------------------------------------
def _im2col(x_nhwc, kh, kw, stride, pad):
    x = jnp.pad(x_nhwc, ((0, 0), (pad, pad), (pad, pad), (0, 0)))
    B, H, W, C = x.shape
    out_h = (H - kh) // stride + 1
    out_w = (W - kw) // stride + 1
    cols = []
    for i in range(kh):
        for j in range(kw):
            cols.append(
                x[:, i: i + out_h * stride: stride, j: j + out_w * stride: stride, :])
    patches = jnp.concatenate(cols, axis=-1)            # [B, oh, ow, kh*kw*C]
    return patches.reshape(B * out_h * out_w, kh * kw * C), out_h, out_w


def _valid_mask(batch, out_h, out_w, m_pad):
    """bf16 (m_pad, 256): lanes [16t,16t+16) are 1.0 iff tap t is in-bounds at row r."""
    hw = out_h * out_w
    r = np.arange(m_pad)
    oh = (r % hw) // out_w
    ow = r % out_w
    real = r < batch * hw
    mask = np.zeros((m_pad, 2 * LANES), np.float32)
    for ki in range(KH):
        for kj in range(KW):
            t = ki * KW + kj
            ok = (real & (oh + ki - 1 >= 0) & (oh + ki - 1 < out_h)
                  & (ow + kj - 1 >= 0) & (ow + kj - 1 < out_w))
            mask[:, C_MID * t: C_MID * (t + 1)] = ok[:, None].astype(np.float32)
    return jnp.asarray(mask, dtype=jnp.bfloat16)


def _pool_matrix(batch, hw, m_pad, b_pad):
    """f32 (b_pad, m_pad): row b averages image b's hw rows; padded rows/cols are 0."""
    P = np.zeros((b_pad, m_pad), np.float32)
    for b in range(batch):
        P[b, b * hw: (b + 1) * hw] = 1.0 / hw
    return jnp.asarray(P)


# ----------------------------------------------------------------------------
# Parameters (deterministic, in-script)
# ----------------------------------------------------------------------------
def _conv_w(key, kh, kw, cin, cout):
    fan_in = kh * kw * cin
    w = jax.random.normal(key, (kh, kw, cin, cout), jnp.float32) / jnp.sqrt(
        jnp.float32(fan_in))
    return w.reshape(kh * kw * cin, cout)


def init_params(key):
    ks = jax.random.split(key, 10)
    bias = lambda k, n: 0.1 * jax.random.normal(k, (1, n), jnp.float32)
    return {
        "stem_w": _conv_w(ks[0], 3, 3, 3, C_STEM),    "stem_b": bias(ks[1], C_STEM),
        "ba_w": _conv_w(ks[2], 1, 1, C_STEM, C_MID),  "ba_b": bias(ks[3], C_MID),
        "bb_w": _conv_w(ks[4], 3, 3, C_MID, C_MID),   "bb_b": bias(ks[5], C_MID),
        "bc_w": _conv_w(ks[6], 1, 1, C_MID, C_FEAT),  "bc_b": bias(ks[7], C_FEAT),
        "sc_w": _conv_w(ks[8], 1, 1, C_STEM, C_FEAT), "sc_b": bias(ks[9], C_FEAT),
    }


def pack_params(p):
    """Pad / fuse raw weights into the 128-lane bf16 layouts the kernel expects (once)."""
    f32, bf16 = jnp.float32, jnp.bfloat16
    w_stem = jnp.zeros((LANES, LANES), f32).at[: KH * KW * 3, :C_STEM].set(p["stem_w"])
    b_stem = jnp.zeros((1, LANES), f32).at[:, :C_STEM].set(p["stem_b"])

    # merged 1x1 (N=256): lanes [16t,16t+16) = reduce copy t, lanes [144,208) = shortcut.
    w_merge = jnp.zeros((LANES, 2 * LANES), f32)
    b_merge = jnp.zeros((1, 2 * LANES), f32)
    for t in range(N_TAPS):
        w_merge = w_merge.at[:C_STEM, C_MID * t: C_MID * (t + 1)].set(p["ba_w"])
        b_merge = b_merge.at[:, C_MID * t: C_MID * (t + 1)].set(p["ba_b"])
    w_merge = w_merge.at[:C_STEM, SC_LO: SC_LO + C_FEAT].set(p["sc_w"])
    b_merge = b_merge.at[:, SC_LO: SC_LO + C_FEAT].set(p["sc_b"])

    w_bb = jnp.zeros((2 * LANES, LANES), f32).at[:A_LANES, :C_MID].set(p["bb_w"])
    b_bb = jnp.zeros((1, LANES), f32).at[:, :C_MID].set(p["bb_b"])
    # expand output (and its bias) land at lanes [16, 80) to line up with the
    # shortcut's position inside the scratch's second 128-lane column.
    w_bc = jnp.zeros((LANES, LANES), f32).at[:C_MID, C_OFF: C_OFF + C_FEAT].set(p["bc_w"])
    b_bc = jnp.zeros((1, LANES), f32).at[:, C_OFF: C_OFF + C_FEAT].set(p["bc_b"])
    return {"w_stem": w_stem.astype(bf16), "b_stem": b_stem,
            "w_merge": w_merge.astype(bf16), "b_merge": b_merge,
            "w_bb": w_bb.astype(bf16), "b_bb": b_bb,
            "w_bc": w_bc.astype(bf16), "b_bc": b_bc}


# ----------------------------------------------------------------------------
# Forward (mirrors AttentiveCNN.forward)
# ----------------------------------------------------------------------------
def attentive_cnn_forward(images_nchw, packed):
    B = images_nchw.shape[0]
    x = jnp.transpose(images_nchw, (0, 2, 3, 1)).astype(jnp.float32)      # NHWC

    # Stem im2col on the raw input (one-time input formatting), zero-padded to
    # (8,128)-aligned tiles and pre-cast to bf16 so its DMA is half-width.
    cols, oh, ow = _im2col(x, KH, KW, stride=2, pad=1)                    # [B*49, 27]
    hw = oh * ow
    m = B * hw
    m_pad = _round_up(m, 8)
    b_pad = _round_up(max(B, 8), 8)
    pad_rows = _round_up(ow + 1, 8)
    # Safety of the garbage in padded rows m..m_pad: a VALID (row, tap) pair always
    # reads a row of the SAME image (the host mask zeroes every out-of-image tap),
    # so padded-row garbage can never reach a valid output; the halo bands only
    # need to cover the largest |row shift| of the 3x3 taps.
    assert pad_rows >= ow + 1, "scratch halo must cover the 3x3 row shifts"
    assert hw >= ow + 2, "an image must span more rows than the largest tap shift"

    xc = (jnp.zeros((m_pad, LANES), jnp.float32)
          .at[:m, : cols.shape[1]].set(cols).astype(jnp.bfloat16))
    vmask = _valid_mask(B, oh, ow, m_pad)                                 # bf16 (m_pad, 256)
    pool = _pool_matrix(B, hw, m_pad, b_pad)                              # f32 (b_pad, m_pad)

    kern = functools.partial(_fused_kernel, w_out=ow, m_pad=m_pad, pad_rows=pad_rows)

    flops = (2 * m_pad * LANES * LANES            # stem
             + 2 * m_pad * LANES * 2 * LANES      # merged 1x1 reduce + shortcut (N=256)
             + 2 * m_pad * 2 * LANES * LANES      # 3x3 conv (K=256)
             + 2 * m_pad * LANES * LANES          # 1x1 expand
             + 2 * b_pad * m_pad * LANES)         # avg pool
    args = (xc, packed["w_stem"], packed["b_stem"], packed["w_merge"],
            packed["b_merge"], packed["w_bb"], packed["b_bb"], packed["w_bc"],
            packed["b_bc"], vmask, pool)
    bytes_accessed = (sum(int(np.prod(a.shape)) * a.dtype.itemsize for a in args)
                      + 4 * (m_pad * LANES + b_pad * LANES))

    # TODO(synk): for production batch sizes, add a leading "parallel" grid axis
    # over row tiles (multiples of 8 rows) so v7x's two TensorCores are both used
    # and input/output DMA is pipelined; at B=2 (104 padded rows) one tile is right.
    v_pad, vg_pad = pl.pallas_call(
        kern,
        out_shape=(jax.ShapeDtypeStruct((m_pad, LANES), jnp.float32),
                   jax.ShapeDtypeStruct((b_pad, LANES), jnp.float32)),
        grid=(1,),
        in_specs=[
            pl.BlockSpec((m_pad, LANES), lambda i: (0, 0)),        # xc (bf16)
            pl.BlockSpec((LANES, LANES), lambda i: (0, 0)),        # w_stem (bf16)
            pl.BlockSpec((1, LANES), lambda i: (0, 0)),            # b_stem (f32)
            pl.BlockSpec((LANES, 2 * LANES), lambda i: (0, 0)),    # w_merge (bf16)
            pl.BlockSpec((1, 2 * LANES), lambda i: (0, 0)),        # b_merge (f32)
            pl.BlockSpec((2 * LANES, LANES), lambda i: (0, 0)),    # w_bb (bf16)
            pl.BlockSpec((1, LANES), lambda i: (0, 0)),            # b_bb (f32)
            pl.BlockSpec((LANES, LANES), lambda i: (0, 0)),        # w_bc (bf16)
            pl.BlockSpec((1, LANES), lambda i: (0, 0)),            # b_bc (f32)
            pl.BlockSpec((m_pad, 2 * LANES), lambda i: (0, 0)),    # tap validity (bf16)
            pl.BlockSpec((b_pad, m_pad), lambda i: (0, 0)),        # avg-pool matrix (f32)
        ],
        out_specs=[
            pl.BlockSpec((m_pad, LANES), lambda i: (0, 0)),        # V slab (lane dense)
            pl.BlockSpec((b_pad, LANES), lambda i: (0, 0)),        # v_g slab (lane dense)
        ],
        scratch_shapes=[pltpu.VMEM((m_pad + 2 * pad_rows, 2 * LANES), jnp.float32)],
        compiler_params=pltpu.CompilerParams(dimension_semantics=("arbitrary",)),
        cost_estimate=pl.CostEstimate(flops=int(flops), transcendentals=0,
                                      bytes_accessed=int(bytes_accessed)),
    )(*args)

    V = v_pad[:m, C_OFF: C_OFF + C_FEAT].reshape(B, hw, C_FEAT)  # == A.view(B,C,-1).transpose(1,2)
    v_g = vg_pad[:B, C_OFF: C_OFF + C_FEAT]                      # == avgpool(A).view(B, -1)
    return V, v_g


# ----------------------------------------------------------------------------
# Pure-JAX reference (same math, unfused, same bf16-operand dot numerics)
# ----------------------------------------------------------------------------
def reference_forward(images_nchw, params):
    bf16 = jnp.bfloat16

    def bdot(x, w):  # mirrors the kernel's MXU dots: bf16 operands, f32 accumulation
        return jax.lax.dot(x.astype(bf16), w.astype(bf16),
                           preferred_element_type=jnp.float32)

    B = images_nchw.shape[0]
    x = jnp.transpose(images_nchw, (0, 2, 3, 1)).astype(jnp.float32)
    cols, oh, ow = _im2col(x, KH, KW, stride=2, pad=1)
    h = jnp.maximum(bdot(cols, params["stem_w"]) + params["stem_b"], 0.0)
    a = jnp.maximum(bdot(h, params["ba_w"]) + params["ba_b"], 0.0)
    a_img = a.reshape(B, oh, ow, C_MID)
    cols_b, _, _ = _im2col(a_img, KH, KW, stride=1, pad=1)
    bmid = jnp.maximum(bdot(cols_b, params["bb_w"]) + params["bb_b"], 0.0)
    sc = bdot(h, params["sc_w"]) + params["sc_b"]
    feat = jnp.maximum(bdot(bmid, params["bc_w"]) + params["bc_b"] + sc, 0.0)
    V = feat.reshape(B, oh * ow, C_FEAT)
    return V, V.mean(axis=1)


if __name__ == "__main__":
    key = jax.random.PRNGKey(0)
    pkey, xkey = jax.random.split(key)
    params = init_params(pkey)
    packed = pack_params(params)
    images = jax.random.normal(xkey, (2, 3, 14, 14), jnp.float32)  # NCHW like PyTorch

    V, v_g = jax.jit(attentive_cnn_forward)(images, packed)
    V, v_g = jax.block_until_ready((V, v_g))

    assert V.shape == (2, 49, C_FEAT), V.shape
    assert v_g.shape == (2, C_FEAT), v_g.shape

    V_ref, vg_ref = reference_forward(images, params)
    # Kernel and reference use identical bf16 dot operands, so V should agree to
    # f32 accumulation noise; a tight tolerance catches mask / shift / packing bugs.
    assert jnp.allclose(V, V_ref, rtol=2e-3, atol=2e-3), \
        float(jnp.max(jnp.abs(V - V_ref)))
    assert jnp.allclose(v_g, vg_ref, rtol=1e-2, atol=1e-2), \
        float(jnp.max(jnp.abs(v_g - vg_ref)))
    # v_g must equal the spatial mean of V (AvgPool2d over the full 7x7 map).
    assert jnp.allclose(v_g, V.mean(axis=1), rtol=1e-2, atol=1e-2)
    print("KERNEL_OK")
</pallas_src>

<mosaic_0001>
module attributes {stable_mosaic.version = 11 : i64} {
  func.func @_fused_kernel(%arg0: i32, %arg1: memref<104x128xbf16, #tpu.memory_space<vmem>>, %arg2: memref<128x128xbf16, #tpu.memory_space<vmem>>, %arg3: memref<1x128xf32, #tpu.memory_space<vmem>>, %arg4: memref<128x256xbf16, #tpu.memory_space<vmem>>, %arg5: memref<1x256xf32, #tpu.memory_space<vmem>>, %arg6: memref<256x128xbf16, #tpu.memory_space<vmem>>, %arg7: memref<1x128xf32, #tpu.memory_space<vmem>>, %arg8: memref<128x128xbf16, #tpu.memory_space<vmem>>, %arg9: memref<1x128xf32, #tpu.memory_space<vmem>>, %arg10: memref<104x256xbf16, #tpu.memory_space<vmem>>, %arg11: memref<8x104xf32, #tpu.memory_space<vmem>>, %arg12: memref<104x128xf32, #tpu.memory_space<vmem>>, %arg13: memref<8x128xf32, #tpu.memory_space<vmem>>, %arg14: memref<120x256xf32, #tpu.memory_space<vmem>>) attributes {dimension_semantics = [#tpu.dimension_semantics<arbitrary>], iteration_bounds = array<i64: 1>, scalar_prefetch = 0 : i64, scratch_operands = 1 : i64, tpu.core_type = #tpu.core_type<tc>, window_params = [{pipeline_mode = #tpu.pipeline_mode<synchronous>, transform_indices = @transform_0, window_bounds = array<i64: 104, 128>}, {pipeline_mode = #tpu.pipeline_mode<synchronous>, transform_indices = @transform_1, window_bounds = array<i64: 128, 128>}, {pipeline_mode = #tpu.pipeline_mode<synchronous>, transform_indices = @transform_2, window_bounds = array<i64: 1, 128>}, {pipeline_mode = #tpu.pipeline_mode<synchronous>, transform_indices = @transform_3, window_bounds = array<i64: 128, 256>}, {pipeline_mode = #tpu.pipeline_mode<synchronous>, transform_indices = @transform_4, window_bounds = array<i64: 1, 256>}, {pipeline_mode = #tpu.pipeline_mode<synchronous>, transform_indices = @transform_5, window_bounds = array<i64: 256, 128>}, {pipeline_mode = #tpu.pipeline_mode<synchronous>, transform_indices = @transform_6, window_bounds = array<i64: 1, 128>}, {pipeline_mode = #tpu.pipeline_mode<synchronous>, transform_indices = @transform_7, window_bounds = array<i64: 128, 128>}, {pipeline_mode = #tpu.pipeline_mode<synchronous>, transform_indices = @transform_8, window_bounds = array<i64: 1, 128>}, {pipeline_mode = #tpu.pipeline_mode<synchronous>, transform_indices = @transform_9, window_bounds = array<i64: 104, 256>}, {pipeline_mode = #tpu.pipeline_mode<synchronous>, transform_indices = @transform_10, window_bounds = array<i64: 8, 104>}, {pipeline_mode = #tpu.pipeline_mode<synchronous>, transform_indices = @transform_11, window_bounds = array<i64: 104, 128>}, {pipeline_mode = #tpu.pipeline_mode<synchronous>, transform_indices = @transform_12, window_bounds = array<i64: 8, 128>}]} {
    %c0 = arith.constant 0 : index
    %c0_0 = arith.constant 0 : index
    %0 = vector.load %arg1[%c0, %c0_0] : memref<104x128xbf16, #tpu.memory_space<vmem>>, vector<104x128xbf16>
    %c0_1 = arith.constant 0 : index
    %c0_2 = arith.constant 0 : index
    %1 = vector.load %arg2[%c0_1, %c0_2] : memref<128x128xbf16, #tpu.memory_space<vmem>>, vector<128x128xbf16>
    %cst = arith.constant dense<0.000000e+00> : vector<104x128xf32>
    %2 = tpu.matmul %0, %1, %cst {dimension_numbers = #tpu.dot_dimension_numbers<[1], [0], [0], [1], [0, 0, 1, 1], [], []>} : vector<104x128xbf16>, vector<128x128xbf16>, vector<104x128xf32> -> vector<104x128xf32>
    %c0_3 = arith.constant 0 : index
    %c0_4 = arith.constant 0 : index
    %3 = vector.load %arg3[%c0_3, %c0_4] : memref<1x128xf32, #tpu.memory_space<vmem>>, vector<1x128xf32>
    %4 = vector.broadcast %3 : vector<1x128xf32> to vector<104x128xf32>
    %5 = arith.addf %2, %4 : vector<104x128xf32>
    %cst_5 = arith.constant 0.000000e+00 : f32
    %6 = vector.broadcast %cst_5 : f32 to vector<104x128xf32>
    %7 = arith.maximumf %5, %6 : vector<104x128xf32>
    %8 = arith.truncf %7 : vector<104x128xf32> to vector<104x128xbf16>
    %c0_6 = arith.constant 0 : index
    %c0_7 = arith.constant 0 : index
    %9 = vector.load %arg4[%c0_6, %c0_7] : memref<128x256xbf16, #tpu.memory_space<vmem>>, vector<128x256xbf16>
    %cst_8 = arith.constant dense<0.000000e+00> : vector<104x256xf32>
    %10 = tpu.matmul %8, %9, %cst_8 {dimension_numbers = #tpu.dot_dimension_numbers<[1], [0], [0], [1], [0, 0, 1, 1], [], []>} : vector<104x128xbf16>, vector<128x256xbf16>, vector<104x256xf32> -> vector<104x256xf32>
    %c0_9 = arith.constant 0 : index
    %c0_10 = arith.constant 0 : index
    %11 = vector.load %arg5[%c0_9, %c0_10] : memref<1x256xf32, #tpu.memory_space<vmem>>, vector<1x256xf32>
    %12 = vector.broadcast %11 : vector<1x256xf32> to vector<104x256xf32>
    %13 = arith.addf %10, %12 : vector<104x256xf32>
    %14 = tpu.iota {dimensions = array<i32: 1>} : vector<1x256xi32>
    %c144_i32 = arith.constant 144 : i32
    %15 = vector.broadcast %c144_i32 : i32 to vector<1x256xi32>
    %16 = arith.cmpi sge, %14, %15 : vector<1x256xi32>
    %17 = arith.extui %16 : vector<1x256xi1> to vector<1x256xi32>
    %18 = arith.sitofp %17 : vector<1x256xi32> to vector<1x256xf32>
    %19 = vector.broadcast %18 : vector<1x256xf32> to vector<104x256xf32>
    %20 = arith.mulf %13, %19 : vector<104x256xf32>
    %21 = arith.maximumf %13, %20 : vector<104x256xf32>
    %cst_11 = arith.constant 0.000000e+00 : f32
    %22 = vector.broadcast %cst_11 : f32 to vector<8x256xf32>
    %c0_12 = arith.constant 0 : index
    %c0_13 = arith.constant 0 : index
    %23 = vector.load %arg14[%c0_12, %c0_13] : memref<120x256xf32, #tpu.memory_space<vmem>>, vector<8x256xf32>
    tpu.vector_store %arg14[%c0_12, %c0_13], %22 {strides = array<i32>} : memref<120x256xf32, #tpu.memory_space<vmem>>, vector<8x256xf32>,
    %c112 = arith.constant 112 : index
    %c0_14 = arith.constant 0 : index
    %24 = vector.load %arg14[%c112, %c0_14] : memref<120x256xf32, #tpu.memory_space<vmem>>, vector<8x256xf32>
    tpu.vector_store %arg14[%c112, %c0_14], %22 {strides = array<i32>} : memref<120x256xf32, #tpu.memory_space<vmem>>, vector<8x256xf32>,
    %c8 = arith.constant 8 : index
    %c0_15 = arith.constant 0 : index
    %25 = vector.load %arg14[%c8, %c0_15] : memref<120x256xf32, #tpu.memory_space<vmem>>, vector<104x256xf32>
    tpu.vector_store %arg14[%c8, %c0_15], %21 {strides = array<i32>} : memref<120x256xf32, #tpu.memory_space<vmem>>, vector<104x256xf32>,
    %cst_16 = arith.constant 0.000000e+00 : f32
    %26 = vector.broadcast %cst_16 : f32 to vector<104x256xf32>
    %c0_17 = arith.constant 0 : index
    %c0_18 = arith.constant 0 : index
    %27 = vector.load %arg14[%c0_17, %c0_18] : memref<120x256xf32, #tpu.memory_space<vmem>>, vector<104x256xf32>
    %c0_i32 = arith.constant 0 : i32
    %28 = vector.broadcast %c0_i32 : i32 to vector<1x256xi32>
    %29 = arith.cmpi sge, %14, %28 : vector<1x256xi32>
    %c16_i32 = arith.constant 16 : i32
    %30 = vector.broadcast %c16_i32 : i32 to vector<1x256xi32>
    %31 = arith.cmpi slt, %14, %30 : vector<1x256xi32>
    %32 = arith.andi %29, %31 : vector<1x256xi1>
    %33 = arith.extui %32 : vector<1x256xi1> to vector<1x256xi32>
    %34 = arith.sitofp %33 : vector<1x256xi32> to vector<1x256xf32>
    %35 = vector.broadcast %34 : vector<1x256xf32> to vector<104x256xf32>
    %36 = arith.mulf %27, %35 : vector<104x256xf32>
    %37 = arith.addf %26, %36 : vector<104x256xf32>
    %c1 = arith.constant 1 : index
    %c0_19 = arith.constant 0 : index
    %38 = vector.load %arg14[%c1, %c0_19] : memref<120x256xf32, #tpu.memory_space<vmem>>, vector<104x256xf32>
    %c16_i32_20 = arith.constant 16 : i32
    %39 = vector.broadcast %c16_i32_20 : i32 to vector<1x256xi32>
    %40 = arith.cmpi sge, %14, %39 : vector<1x256xi32>
    %c32_i32 = arith.constant 32 : i32
    %41 = vector.broadcast %c32_i32 : i32 to vector<1x256xi32>
    %42 = arith.cmpi slt, %14, %41 : vector<1x256xi32>
    %43 = arith.andi %40, %42 : vector<1x256xi1>
    %44 = arith.extui %43 : vector<1x256xi1> to vector<1x256xi32>
    %45 = arith.sitofp %44 : vector<1x256xi32> to vector<1x256xf32>
    %46 = vector.broadcast %45 : vector<1x256xf32> to vector<104x256xf32>
    %47 = arith.mulf %38, %46 : vector<104x256xf32>
    %48 = arith.addf %37, %47 : vector<104x256xf32>
    %c2 = arith.constant 2 : index
    %c0_21 = arith.constant 0 : index
    %49 = vector.load %arg14[%c2, %c0_21] : memref<120x256xf32, #tpu.memory_space<vmem>>, vector<104x256xf32>
    %c32_i32_22 = arith.constant 32 : i32
    %50 = vector.broadcast %c32_i32_22 : i32 to vector<1x256xi32>
    %51 = arith.cmpi sge, %14, %50 : vector<1x256xi32>
    %c48_i32 = arith.constant 48 : i32
    %52 = vector.broadcast %c48_i32 : i32 to vector<1x256xi32>
    %53 = arith.cmpi slt, %14, %52 : vector<1x256xi32>
    %54 = arith.andi %51, %53 : vector<1x256xi1>
    %55 = arith.extui %54 : vector<1x256xi1> to vector<1x256xi32>
    %56 = arith.sitofp %55 : vector<1x256xi32> to vector<1x256xf32>
    %57 = vector.broadcast %56 : vector<1x256xf32> to vector<104x256xf32>
    %58 = arith.mulf %49, %57 : vector<104x256xf32>
    %59 = arith.addf %48, %58 : vector<104x256xf32>
    %c7 = arith.constant 7 : index
    %c0_23 = arith.constant 0 : index
    %60 = vector.load %arg14[%c7, %c0_23] : memref<120x256xf32, #tpu.memory_space<vmem>>, vector<104x256xf32>
    %c48_i32_24 = arith.constant 48 : i32
    %61 = vector.broadcast %c48_i32_24 : i32 to vector<1x256xi32>
    %62 = arith.cmpi sge, %14, %61 : vector<1x256xi32>
    %c64_i32 = arith.constant 64 : i32
    %63 = vector.broadcast %c64_i32 : i32 to vector<1x256xi32>
    %64 = arith.cmpi slt, %14, %63 : vector<1x256xi32>
    %65 = arith.andi %62, %64 : vector<1x256xi1>
    %66 = arith.extui %65 : vector<1x256xi1> to vector<1x256xi32>
    %67 = arith.sitofp %66 : vector<1x256xi32> to vector<1x256xf32>
    %68 = vector.broadcast %67 : vector<1x256xf32> to vector<104x256xf32>
    %69 = arith.mulf %60, %68 : vector<104x256xf32>
    %70 = arith.addf %59, %69 : vector<104x256xf32>
    %c8_25 = arith.constant 8 : index
    %c0_26 = arith.constant 0 : index
    %71 = vector.load %arg14[%c8_25, %c0_26] : memref<120x256xf32, #tpu.memory_space<vmem>>, vector<104x256xf32>
    %c64_i32_27 = arith.constant 64 : i32
    %72 = vector.broadcast %c64_i32_27 : i32 to vector<1x256xi32>
    %73 = arith.cmpi sge, %14, %72 : vector<1x256xi32>
    %c80_i32 = arith.constant 80 : i32
    %74 = vector.broadcast %c80_i32 : i32 to vector<1x256xi32>
    %75 = arith.cmpi slt, %14, %74 : vector<1x256xi32>
    %76 = arith.andi %73, %75 : vector<1x256xi1>
    %77 = arith.extui %76 : vector<1x256xi1> to vector<1x256xi32>
    %78 = arith.sitofp %77 : vector<1x256xi32> to vector<1x256xf32>
    %79 = vector.broadcast %78 : vector<1x256xf32> to vector<104x256xf32>
    %80 = arith.mulf %71, %79 : vector<104x256xf32>
    %81 = arith.addf %70, %80 : vector<104x256xf32>
    %c9 = arith.constant 9 : index
    %c0_28 = arith.constant 0 : index
    %82 = vector.load %arg14[%c9, %c0_28] : memref<120x256xf32, #tpu.memory_space<vmem>>, vector<104x256xf32>
    %c80_i32_29 = arith.constant 80 : i32
    %83 = vector.broadcast %c80_i32_29 : i32 to vector<1x256xi32>
    %84 = arith.cmpi sge, %14, %83 : vector<1x256xi32>
    %c96_i32 = arith.constant 96 : i32
    %85 = vector.broadcast %c96_i32 : i32 to vector<1x256xi32>
    %86 = arith.cmpi slt, %14, %85 : vector<1x256xi32>
    %87 = arith.andi %84, %86 : vector<1x256xi1>
    %88 = arith.extui %87 : vector<1x256xi1> to vector<1x256xi32>
    %89 = arith.sitofp %88 : vector<1x256xi32> to vector<1x256xf32>
    %90 = vector.broadcast %89 : vector<1x256xf32> to vector<104x256xf32>
    %91 = arith.mulf %82, %90 : vector<104x256xf32>
    %92 = arith.addf %81, %91 : vector<104x256xf32>
    %c14 = arith.constant 14 : index
    %c0_30 = arith.constant 0 : index
    %93 = vector.load %arg14[%c14, %c0_30] : memref<120x256xf32, #tpu.memory_space<vmem>>, vector<104x256xf32>
    %c96_i32_31 = arith.constant 96 : i32
    %94 = vector.broadcast %c96_i32_31 : i32 to vector<1x256xi32>
    %95 = arith.cmpi sge, %14, %94 : vector<1x256xi32>
    %c112_i32 = arith.constant 112 : i32
    %96 = vector.broadcast %c112_i32 : i32 to vector<1x256xi32>
    %97 = arith.cmpi slt, %14, %96 : vector<1x256xi32>
    %98 = arith.andi %95, %97 : vector<1x256xi1>
    %99 = arith.extui %98 : vector<1x256xi1> to vector<1x256xi32>
    %100 = arith.sitofp %99 : vector<1x256xi32> to vector<1x256xf32>
    %101 = vector.broadcast %100 : vector<1x256xf32> to vector<104x256xf32>
    %102 = arith.mulf %93, %101 : vector<104x256xf32>
    %103 = arith.addf %92, %102 : vector<104x256xf32>
    %c15 = arith.constant 15 : index
    %c0_32 = arith.constant 0 : index
    %104 = vector.load %arg14[%c15, %c0_32] : memref<120x256xf32, #tpu.memory_space<vmem>>, vector<104x256xf32>
    %c112_i32_33 = arith.constant 112 : i32
    %105 = vector.broadcast %c112_i32_33 : i32 to vector<1x256xi32>
    %106 = arith.cmpi sge, %14, %105 : vector<1x256xi32>
    %c128_i32 = arith.constant 128 : i32
    %107 = vector.broadcast %c128_i32 : i32 to vector<1x256xi32>
    %108 = arith.cmpi slt, %14, %107 : vector<1x256xi32>
    %109 = arith.andi %106, %108 : vector<1x256xi1>
    %110 = arith.extui %109 : vector<1x256xi1> to vector<1x256xi32>
    %111 = arith.sitofp %110 : vector<1x256xi32> to vector<1x256xf32>
    %112 = vector.broadcast %111 : vector<1x256xf32> to vector<104x256xf32>
    %113 = arith.mulf %104, %112 : vector<104x256xf32>
    %114 = arith.addf %103, %113 : vector<104x256xf32>
    %c16 = arith.constant 16 : index
    %c0_34 = arith.constant 0 : index
    %115 = vector.load %arg14[%c16, %c0_34] : memref<120x256xf32, #tpu.memory_space<vmem>>, vector<104x256xf32>
    %c128_i32_35 = arith.constant 128 : i32
    %116 = vector.broadcast %c128_i32_35 : i32 to vector<1x256xi32>
    %117 = arith.cmpi sge, %14, %116 : vector<1x256xi32>
    %c144_i32_36 = arith.constant 144 : i32
    %118 = vector.broadcast %c144_i32_36 : i32 to vector<1x256xi32>
    %119 = arith.cmpi slt, %14, %118 : vector<1x256xi32>
    %120 = arith.andi %117, %119 : vector<1x256xi1>
    %121 = arith.extui %120 : vector<1x256xi1> to vector<1x256xi32>
    %122 = arith.sitofp %121 : vector<1x256xi32> to vector<1x256xf32>
    %123 = vector.broadcast %122 : vector<1x256xf32> to vector<104x256xf32>
    %124 = arith.mulf %115, %123 : vector<104x256xf32>
    %125 = arith.addf %114, %124 : vector<104x256xf32>
    %c0_37 = arith.constant 0 : index
    %c0_38 = arith.constant 0 : index
    %126 = vector.load %arg10[%c0_37, %c0_38] : memref<104x256xbf16, #tpu.memory_space<vmem>>, vector<104x256xbf16>
    %127 = arith.extf %126 : vector<104x256xbf16> to vector<104x256xf32>
    %128 = arith.mulf %125, %127 : vector<104x256xf32>
    %129 = arith.truncf %128 : vector<104x256xf32> to vector<104x256xbf16>
    %c0_39 = arith.constant 0 : index
    %c0_40 = arith.constant 0 : index
    %130 = vector.load %arg6[%c0_39, %c0_40] : memref<256x128xbf16, #tpu.memory_space<vmem>>, vector<256x128xbf16>
    %cst_41 = arith.constant dense<0.000000e+00> : vector<104x128xf32>
    %131 = tpu.matmul %129, %130, %cst_41 {dimension_numbers = #tpu.dot_dimension_numbers<[1], [0], [0], [1], [0, 0, 1, 1], [], []>} : vector<104x256xbf16>, vector<256x128xbf16>, vector<104x128xf32> -> vector<104x128xf32>
    %c0_42 = arith.constant 0 : index
    %c0_43 = arith.constant 0 : index
    %132 = vector.load %arg7[%c0_42, %c0_43] : memref<1x128xf32, #tpu.memory_space<vmem>>, vector<1x128xf32>
    %133 = vector.broadcast %132 : vector<1x128xf32> to vector<104x128xf32>
    %134 = arith.addf %131, %133 : vector<104x128xf32>
    %cst_44 = arith.constant 0.000000e+00 : f32
    %135 = vector.broadcast %cst_44 : f32 to vector<104x128xf32>
    %136 = arith.maximumf %134, %135 : vector<104x128xf32>
    %c8_45 = arith.constant 8 : index
    %c128 = arith.constant 128 : index
    %137 = vector.load %arg14[%c8_45, %c128] : memref<120x256xf32, #tpu.memory_space<vmem>>, vector<104x128xf32>
    %138 = arith.truncf %136 : vector<104x128xf32> to vector<104x128xbf16>
    %c0_46 = arith.constant 0 : index
    %c0_47 = arith.constant 0 : index
    %139 = vector.load %arg8[%c0_46, %c0_47] : memref<128x128xbf16, #tpu.memory_space<vmem>>, vector<128x128xbf16>
    %cst_48 = arith.constant dense<0.000000e+00> : vector<104x128xf32>
    %140 = tpu.matmul %138, %139, %cst_48 {dimension_numbers = #tpu.dot_dimension_numbers<[1], [0], [0], [1], [0, 0, 1, 1], [], []>} : vector<104x128xbf16>, vector<128x128xbf16>, vector<104x128xf32> -> vector<104x128xf32>
    %c0_49 = arith.constant 0 : index
    %c0_50 = arith.constant 0 : index
    %141 = vector.load %arg9[%c0_49, %c0_50] : memref<1x128xf32, #tpu.memory_space<vmem>>, vector<1x128xf32>
    %142 = vector.broadcast %141 : vector<1x128xf32> to vector<104x128xf32>
    %143 = arith.addf %140, %142 : vector<104x128xf32>
    %144 = arith.addf %143, %137 : vector<104x128xf32>
    %cst_51 = arith.constant 0.000000e+00 : f32
    %145 = vector.broadcast %cst_51 : f32 to vector<104x128xf32>
    %146 = arith.maximumf %144, %145 : vector<104x128xf32>
    %c0_52 = arith.constant 0 : index
    %c0_53 = arith.constant 0 : index
    %147 = vector.load %arg12[%c0_52, %c0_53] : memref<104x128xf32, #tpu.memory_space<vmem>>, vector<104x128xf32>
    tpu.vector_store %arg12[%c0_52, %c0_53], %146 {strides = array<i32>} : memref<104x128xf32, #tpu.memory_space<vmem>>, vector<104x128xf32>,
    %c0_54 = arith.constant 0 : index
    %c0_55 = arith.constant 0 : index
    %148 = vector.load %arg11[%c0_54, %c0_55] : memref<8x104xf32, #tpu.memory_space<vmem>>, vector<8x104xf32>
    %cst_56 = arith.constant dense<0.000000e+00> : vector<8x128xf32>
    %149 = tpu.matmul %148, %146, %cst_56 {dimension_numbers = #tpu.dot_dimension_numbers<[1], [0], [0], [1], [0, 0, 1, 1], [], []>} : vector<8x104xf32>, vector<104x128xf32>, vector<8x128xf32> -> vector<8x128xf32>
    %c0_57 = arith.constant 0 : index
    %c0_58 = arith.constant 0 : index
    %150 = vector.load %arg13[%c0_57, %c0_58] : memref<8x128xf32, #tpu.memory_space<vmem>>, vector<8x128xf32>
    tpu.vector_store %arg13[%c0_57, %c0_58], %149 {strides = array<i32>} : memref<8x128xf32, #tpu.memory_space<vmem>>, vector<8x128xf32>,
    return
  }
  func.func @transform_0(%arg0: i32) -> (i32, i32) {
    %c0_i32 = arith.constant 0 : i32
    %c0_i32_0 = arith.constant 0 : i32
    %c0_i32_1 = arith.constant 0 : i32
    return %c0_i32, %c0_i32_0 : i32, i32
  }
  func.func @transform_1(%arg0: i32) -> (i32, i32) {
    %c0_i32 = arith.constant 0 : i32
    %c0_i32_0 = arith.constant 0 : i32
    %c0_i32_1 = arith.constant 0 : i32
    return %c0_i32, %c0_i32_0 : i32, i32
  }
  func.func @transform_2(%arg0: i32) -> (i32, i32) {
    %c0_i32 = arith.constant 0 : i32
    %c0_i32_0 = arith.constant 0 : i32
    %c0_i32_1 = arith.constant 0 : i32
    return %c0_i32, %c0_i32_0 : i32, i32
  }
  func.func @transform_3(%arg0: i32) -> (i32, i32) {
    %c0_i32 = arith.constant 0 : i32
    %c0_i32_0 = arith.constant 0 : i32
    %c0_i32_1 = arith.constant 0 : i32
    return %c0_i32, %c0_i32_0 : i32, i32
  }
  func.func @transform_4(%arg0: i32) -> (i32, i32) {
    %c0_i32 = arith.constant 0 : i32
    %c0_i32_0 = arith.constant 0 : i32
    %c0_i32_1 = arith.constant 0 : i32
    return %c0_i32, %c0_i32_0 : i32, i32
  }
  func.func @transform_5(%arg0: i32) -> (i32, i32) {
    %c0_i32 = arith.constant 0 : i32
    %c0_i32_0 = arith.constant 0 : i32
    %c0_i32_1 = arith.constant 0 : i32
    return %c0_i32, %c0_i32_0 : i32, i32
  }
  func.func @transform_6(%arg0: i32) -> (i32, i32) {
    %c0_i32 = arith.constant 0 : i32
    %c0_i32_0 = arith.constant 0 : i32
    %c0_i32_1 = arith.constant 0 : i32
    return %c0_i32, %c0_i32_0 : i32, i32
  }
  func.func @transform_7(%arg0: i32) -> (i32, i32) {
    %c0_i32 = arith.constant 0 : i32
    %c0_i32_0 = arith.constant 0 : i32
    %c0_i32_1 = arith.constant 0 : i32
    return %c0_i32, %c0_i32_0 : i32, i32
  }
  func.func @transform_8(%arg0: i32) -> (i32, i32) {
    %c0_i32 = arith.constant 0 : i32
    %c0_i32_0 = arith.constant 0 : i32
    %c0_i32_1 = arith.constant 0 : i32
    return %c0_i32, %c0_i32_0 : i32, i32
  }
  func.func @transform_9(%arg0: i32) -> (i32, i32) {
    %c0_i32 = arith.constant 0 : i32
    %c0_i32_0 = arith.constant 0 : i32
    %c0_i32_1 = arith.constant 0 : i32
    return %c0_i32, %c0_i32_0 : i32, i32
  }
  func.func @transform_10(%arg0: i32) -> (i32, i32) {
    %c0_i32 = arith.constant 0 : i32
    %c0_i32_0 = arith.constant 0 : i32
    %c0_i32_1 = arith.constant 0 : i32
    return %c0_i32, %c0_i32_0 : i32, i32
  }
  func.func @transform_11(%arg0: i32) -> (i32, i32) {
    %c0_i32 = arith.constant 0 : i32
    %c0_i32_0 = arith.constant 0 : i32
    %c0_i32_1 = arith.constant 0 : i32
    return %c0_i32, %c0_i32_0 : i32, i32
  }
  func.func @transform_12(%arg0: i32) -> (i32, i32) {
    %c0_i32 = arith.constant 0 : i32
    %c0_i32_0 = arith.constant 0 : i32
    %c0_i32_1 = arith.constant 0 : i32
    return %c0_i32, %c0_i32_0 : i32, i32
  }
}

</mosaic_0001>

<llo_original>
// kernel: attentive_cnn_forward.1
$region0: #{attentive_cnn_forward.1}
  #allocation0 [shape = 'u32[]', space=smem, size = 0x4, offset = 0x4, fixed_abs, tag = 'smem constant byte address 0x4 - core index']
  #allocation1 [shape = 'u32[144,128]{1,0:T(1,128)}', space=vmem, size = 0x12000, scoped, tag = 'internal scratch']
  #allocation2 [shape = 'f32[120,256]{1,0:T(8,128)}', space=vmem, size = 0x1e000, scoped, tag = 'scratch operand']
  %s0 = inlined_call_operand.vmem [shape: bf16[104,128], index: 0, kind: input, shape index: {}]
  %s1 = inlined_call_operand.vmem [shape: bf16[128,128], index: 1, kind: input, shape index: {}]
  %s2 = inlined_call_operand.vmem [shape: f32[1,128], index: 2, kind: input, shape index: {}]
  %s3 = inlined_call_operand.vmem [shape: bf16[128,256], index: 3, kind: input, shape index: {}]
  %s4 = inlined_call_operand.vmem [shape: f32[1,256], index: 4, kind: input, shape index: {}]
  %s5 = inlined_call_operand.vmem [shape: bf16[256,128], index: 5, kind: input, shape index: {}]
  %s6 = inlined_call_operand.vmem [shape: f32[1,128], index: 6, kind: input, shape index: {}]
  %s7 = inlined_call_operand.vmem [shape: bf16[128,128], index: 7, kind: input, shape index: {}]
  %s8 = inlined_call_operand.vmem [shape: f32[1,128], index: 8, kind: input, shape index: {}]
  %s9 = inlined_call_operand.vmem [shape: bf16[104,256], index: 9, kind: input, shape index: {}]
  %s10 = inlined_call_operand.vmem [shape: f32[8,104], index: 10, kind: input, shape index: {}]
  %s11 = inlined_call_operand.vmem [shape: f32[104,128], index: 11, kind: output, shape index: {0}]
  %s12 = inlined_call_operand.vmem [shape: f32[8,128], index: 12, kind: output, shape index: {1}]
  %13 = xla_tuple %s11, %s12
  %s14 = sld [smem:[#allocation0]]
  $region62: #{attentive_cnn_forward.1} parent=0
    _
  %s16 = ssub.s32 1, %s14
  %s17 = scalar_select 0, %s16, %s14
  // Predicated region
  $region2: #{attentive_cnn_forward.1} parent=0 // pred_check
    _
  $region3: #{attentive_cnn_forward.1} parent=0 // pred_check_branch
    %19 = sbr.rel (0) target = $region5
  $region4: #{attentive_cnn_forward.1} parent=0 // pred_region
    _
  $region5: #{attentive_cnn_forward.1} parent=0 // pred_fallthru
    _
  // Predicated region
  $region6: #{attentive_cnn_forward.1} parent=0 // pred_check
    _
  $region7: #{attentive_cnn_forward.1} parent=0 // pred_check_branch
    %21 = sbr.rel (0) target = $region9
  $region8: #{attentive_cnn_forward.1} parent=0 // pred_region
    _
  $region9: #{attentive_cnn_forward.1} parent=0 // pred_fallthru
    _
  // Predicated region
  $region10: #{attentive_cnn_forward.1} parent=0 // pred_check
    _
  $region11: #{attentive_cnn_forward.1} parent=0 // pred_check_branch
    %23 = sbr.rel (0) target = $region13
  $region12: #{attentive_cnn_forward.1} parent=0 // pred_region
    _
  $region13: #{attentive_cnn_forward.1} parent=0 // pred_fallthru
    _
  // Predicated region
  $region14: #{attentive_cnn_forward.1} parent=0 // pred_check
    _
  $region15: #{attentive_cnn_forward.1} parent=0 // pred_check_branch
    %25 = sbr.rel (0) target = $region17
  $region16: #{attentive_cnn_forward.1} parent=0 // pred_region
    _
  $region17: #{attentive_cnn_forward.1} parent=0 // pred_fallthru
    _
  // Predicated region
  $region18: #{attentive_cnn_forward.1} parent=0 // pred_check
    _
  $region19: #{attentive_cnn_forward.1} parent=0 // pred_check_branch
    %27 = sbr.rel (0) target = $region21
  $region20: #{attentive_cnn_forward.1} parent=0 // pred_region
    _
  $region21: #{attentive_cnn_forward.1} parent=0 // pred_fallthru
    _
  // Predicated region
  $region22: #{attentive_cnn_forward.1} parent=0 // pred_check
    _
  $region23: #{attentive_cnn_forward.1} parent=0 // pred_check_branch
    %29 = sbr.rel (0) target = $region25
  $region24: #{attentive_cnn_forward.1} parent=0 // pred_region
    _
  $region25: #{attentive_cnn_forward.1} parent=0 // pred_fallthru
    _
  // Predicated region
  $region26: #{attentive_cnn_forward.1} parent=0 // pred_check
    _
  $region27: #{attentive_cnn_forward.1} parent=0 // pred_check_branch
    %31 = sbr.rel (0) target = $region29
  $region28: #{attentive_cnn_forward.1} parent=0 // pred_region
    _
  $region29: #{attentive_cnn_forward.1} parent=0 // pred_fallthru
    _
  // Predicated region
  $region30: #{attentive_cnn_forward.1} parent=0 // pred_check
    _
  $region31: #{attentive_cnn_forward.1} parent=0 // pred_check_branch
    %33 = sbr.rel (0) target = $region33
  $region32: #{attentive_cnn_forward.1} parent=0 // pred_region
    _
  $region33: #{attentive_cnn_forward.1} parent=0 // pred_fallthru
    _
  // Predicated region
  $region34: #{attentive_cnn_forward.1} parent=0 // pred_check
    _
  $region35: #{attentive_cnn_forward.1} parent=0 // pred_check_branch
    %35 = sbr.rel (0) target = $region37
  $region36: #{attentive_cnn_forward.1} parent=0 // pred_region
    _
  $region37: #{attentive_cnn_forward.1} parent=0 // pred_fallthru
    _
  // Predicated region
  $region38: #{attentive_cnn_forward.1} parent=0 // pred_check
    _
  $region39: #{attentive_cnn_forward.1} parent=0 // pred_check_branch
    %37 = sbr.rel (0) target = $region41
  $region40: #{attentive_cnn_forward.1} parent=0 // pred_region
    _
  $region41: #{attentive_cnn_forward.1} parent=0 // pred_fallthru
    _
  // Predicated region
  $region42: #{attentive_cnn_forward.1} parent=0 // pred_check
    _
  $region43: #{attentive_cnn_forward.1} parent=0 // pred_check_branch
    %39 = sbr.rel (0) target = $region45
  $region44: #{attentive_cnn_forward.1} parent=0 // pred_region
    _
  $region45: #{attentive_cnn_forward.1} parent=0 // pred_fallthru
    _
  %v41 = vld [vmem:[%s0] sm:$0xf]
  %v42 = vld [vmem:[%s0 + $0x4] sm:$0xf]
  %v43 = vld [vmem:[%s0 + $0x8] sm:$0xf]
  %v44 = vld [vmem:[%s0 + $0xc] sm:$0xf]
  %v45 = vld [vmem:[%s0 + $0x10] sm:$0xf]
  %v46 = vld [vmem:[%s0 + $0x14] sm:$0xf]
  %v47 = vld [vmem:[%s0 + $0x18] sm:$0xf]
  %v48 = vld [vmem:[%s0 + $0x1c] sm:$0xf]
  %v49 = vld [vmem:[%s0 + $0x20] sm:$0xf]
  %v50 = vld [vmem:[%s0 + $0x24] sm:$0xf]
  %v51 = vld [vmem:[%s0 + $0x28] sm:$0xf]
  %v52 = vld [vmem:[%s0 + $0x2c] sm:$0xf]
  %v53 = vld [vmem:[%s0 + $0x30] sm:$0xf]
  %v54 = vld [vmem:[%s1] sm:$0xf]
  %v55 = vld [vmem:[%s1 + $0x4] sm:$0xf]
  %v56 = vld [vmem:[%s1 + $0x8] sm:$0xf]
  %v57 = vld [vmem:[%s1 + $0xc] sm:$0xf]
  %v58 = vld [vmem:[%s1 + $0x10] sm:$0xf]
  %v59 = vld [vmem:[%s1 + $0x14] sm:$0xf]
  %v60 = vld [vmem:[%s1 + $0x18] sm:$0xf]
  %v61 = vld [vmem:[%s1 + $0x1c] sm:$0xf]
  %v62 = vld [vmem:[%s1 + $0x20] sm:$0xf]
  %v63 = vld [vmem:[%s1 + $0x24] sm:$0xf]
  %v64 = vld [vmem:[%s1 + $0x28] sm:$0xf]
  %v65 = vld [vmem:[%s1 + $0x2c] sm:$0xf]
  %v66 = vld [vmem:[%s1 + $0x30] sm:$0xf]
  %v67 = vld [vmem:[%s1 + $0x34] sm:$0xf]
  %v68 = vld [vmem:[%s1 + $0x38] sm:$0xf]
  %v69 = vld [vmem:[%s1 + $0x3c] sm:$0xf]
  %v70 = vld [vmem:[%s2] sm:$0x1]
  %v72 = vlaneseq
  %v73 = vshrl.u32 %v72, 7
  %v74 = vsub.s32 0, %v73
  %v75 = vrot.slane %v70, %v74
  %v90 = vunpack.c.l.b16 %v41
  %v91 = vunpack.c.l.b16 %v42
  %v92 = vunpack.c.l.b16 %v43
  %v93 = vunpack.c.l.b16 %v44
  %v94 = vunpack.c.l.b16 %v45
  %v95 = vunpack.c.l.b16 %v46
  %v96 = vunpack.c.l.b16 %v47
  %v97 = vunpack.c.l.b16 %v48
  %v98 = vunpack.c.l.b16 %v49
  %v99 = vunpack.c.l.b16 %v50
  %v100 = vunpack.c.l.b16 %v51
  %v101 = vunpack.c.l.b16 %v52
  %v102 = vunpack.c.l.b16 %v53
  %v103 = vpack.c.b16 %v91, %v90
  %v104 = vpack.c.b16 %v93, %v92
  %v105 = vpack.c.b16 %v95, %v94
  %v106 = vpack.c.b16 %v97, %v96
  %v107 = vpack.c.b16 %v99, %v98
  %v108 = vpack.c.b16 %v101, %v100
  %v109 = vpack.c.b16 %v102, %v102
  %v133 = vunpack.c.l.b16 %v54
  %v134 = vunpack.c.l.b16 %v55
  %v135 = vunpack.c.l.b16 %v56
  %v136 = vunpack.c.l.b16 %v57
  %v137 = vunpack.c.l.b16 %v58
  %v138 = vunpack.c.l.b16 %v59
  %v139 = vunpack.c.l.b16 %v60
  %v140 = vunpack.c.l.b16 %v61
  %v141 = vunpack.c.l.b16 %v62
  %v142 = vunpack.c.l.b16 %v63
  %v143 = vunpack.c.l.b16 %v64
  %v144 = vunpack.c.l.b16 %v65
  %v145 = vunpack.c.l.b16 %v66
  %v146 = vunpack.c.l.b16 %v67
  %v147 = vunpack.c.l.b16 %v68
  %v148 = vunpack.c.l.b16 %v69
  %v149 = vpack.c.b16 %v134, %v133
  %v150 = vpack.c.b16 %v136, %v135
  %v151 = vpack.c.b16 %v138, %v137
  %v152 = vpack.c.b16 %v140, %v139
  %v153 = vpack.c.b16 %v142, %v141
  %v154 = vpack.c.b16 %v144, %v143
  %v155 = vpack.c.b16 %v146, %v145
  %v156 = vpack.c.b16 %v148, %v147
  %165 = vmatprep.subr.bf16.mxu0 0
  %166 = vmatpush1.bf16.msra.mxu0 %v149
  %167 = vmatprep.subr.bf16.mxu0 0
  %168 = vmatpush1.bf16.msra.mxu0 %v150
  %169 = vmatprep.subr.bf16.mxu0 0
  %170 = vmatpush1.bf16.msra.mxu0 %v151
  %171 = vmatprep.subr.bf16.mxu0 0
  %172 = vmatpush1.bf16.msra.mxu0 %v152
  %173 = vmatprep.subr.bf16.mxu0 0
  %174 = vmatpush1.bf16.msra.mxu0 %v153
  %175 = vmatprep.subr.bf16.mxu0 0
  %176 = vmatpush1.bf16.msra.mxu0 %v154
  %177 = vmatprep.subr.bf16.mxu0 0
  %178 = vmatpush1.bf16.msra.mxu0 %v155
  %179 = vmatprep.subr.bf16.mxu0 0
  %180 = vmatpush1.bf16.msra.mxu0 %v156
  %181 = vmatprep.subr.bf16.mxu0 0
  %182 = vmatpush1.bf16.msra.mxu0 0
  %183 = vmatprep.subr.bf16.mxu0 0
  %184 = vmatpush1.bf16.msra.mxu0 0
  %185 = vmatprep.subr.bf16.mxu0 0
  %186 = vmatpush1.bf16.msra.mxu0 0
  %187 = vmatprep.subr.bf16.mxu0 0
  %188 = vmatpush1.bf16.msra.mxu0 0
  %189 = vmatprep.subr.bf16.mxu0 0
  %190 = vmatpush1.bf16.msra.mxu0 0
  %191 = vmatprep.subr.bf16.mxu0 0
  %192 = vmatpush1.bf16.msra.mxu0 0
  %193 = vmatprep.subr.bf16.mxu0 0
  %194 = vmatpush1.bf16.msra.mxu0 0
  %195 = vmatprep.subr.bf16.mxu0 0
  %196 = vmatpush1.bf16.msra.mxu0 0
  %197 = vmatprep.mubr.bf16.mxu0 0
  %198 = vmatmul.mubr.bf16.gmra.mrb[0].mxu0 %v103
  %v199 = vpop.f32.mrb[0].mxu0
  %v200 = vadd.f32 %v75, %v199
  %v201 = vpop.f32.mrb[0].mxu0
  %v202 = vpop.f32.mrb[0].mxu0
  %v203 = vadd.f32 %v75, %v202
  %v204 = vpop.f32.mrb[0].mxu0
  %205 = vmatprep.mubr.bf16.mxu0 0
  %206 = vmatmul.mubr.bf16.gmra.mrb[0].mxu0 %v104
  %v207 = vpop.f32.mrb[0].mxu0
  %v208 = vadd.f32 %v75, %v207
  %v209 = vpop.f32.mrb[0].mxu0
  %v210 = vpop.f32.mrb[0].mxu0
  %v211 = vadd.f32 %v75, %v210
  %v212 = vpop.f32.mrb[0].mxu0
  %213 = vmatprep.mubr.bf16.mxu0 0
  %214 = vmatmul.mubr.bf16.gmra.mrb[0].mxu0 %v105
  %v215 = vpop.f32.mrb[0].mxu0
  %v216 = vadd.f32 %v75, %v215
  %v217 = vpop.f32.mrb[0].mxu0
  %v218 = vpop.f32.mrb[0].mxu0
  %v219 = vadd.f32 %v75, %v218
  %v220 = vpop.f32.mrb[0].mxu0
  %221 = vmatprep.mubr.bf16.mxu0 0
  %222 = vmatmul.mubr.bf16.gmra.mrb[0].mxu0 %v106
  %v223 = vpop.f32.mrb[0].mxu0
  %v224 = vadd.f32 %v75, %v223
  %v225 = vpop.f32.mrb[0].mxu0
  %v226 = vpop.f32.mrb[0].mxu0
  %v227 = vadd.f32 %v75, %v226
  %v228 = vpop.f32.mrb[0].mxu0
  %229 = vmatprep.mubr.bf16.mxu0 0
  %230 = vmatmul.mubr.bf16.gmra.mrb[0].mxu0 %v107
  %v231 = vpop.f32.mrb[0].mxu0
  %v232 = vadd.f32 %v75, %v231
  %v233 = vpop.f32.mrb[0].mxu0
  %v234 = vpop.f32.mrb[0].mxu0
  %v235 = vadd.f32 %v75, %v234
  %v236 = vpop.f32.mrb[0].mxu0
  %237 = vmatprep.mubr.bf16.mxu0 0
  %238 = vmatmul.mubr.bf16.gmra.mrb[0].mxu0 %v108
  %v239 = vpop.f32.mrb[0].mxu0
  %v240 = vadd.f32 %v75, %v239
  %v241 = vpop.f32.mrb[0].mxu0
  %v242 = vpop.f32.mrb[0].mxu0
  %v243 = vadd.f32 %v75, %v242
  %v244 = vpop.f32.mrb[0].mxu0
  %245 = vmatprep.mubr.bf16.mxu0 0
  %246 = vmatmul.mubr.bf16.gmra.mrb[0].mxu0 %v109
  %v247 = vpop.f32.mrb[0].mxu0
  %v248 = vadd.f32 %v75, %v247
  %v249 = vpop.f32.mrb[0].mxu0
  %v250 = vpop.f32.mrb[0].mxu0
  %v251 = vpop.f32.mrb[0].mxu0
  %252 = vdwg.mxu0
  %v253 = vmax.f32 %v200, 0.0
  %v254 = vmax.f32 %v203, 0.0
  %v255 = vmax.f32 %v208, 0.0
  %v256 = vmax.f32 %v211, 0.0
  %v257 = vmax.f32 %v216, 0.0
  %v258 = vmax.f32 %v219, 0.0
  %v259 = vmax.f32 %v224, 0.0
  %v260 = vmax.f32 %v227, 0.0
  %v261 = vmax.f32 %v232, 0.0
  %v262 = vmax.f32 %v235, 0.0
  %v263 = vmax.f32 %v240, 0.0
  %v264 = vmax.f32 %v243, 0.0
  %v265 = vmax.f32 %v248, 0.0
  %v266 = vpack.c.bf16 %v254, %v253
  %v267 = vpack.c.bf16 %v256, %v255
  %v268 = vpack.c.bf16 %v258, %v257
  %v269 = vpack.c.bf16 %v260, %v259
  %v270 = vpack.c.bf16 %v262, %v261
  %v271 = vpack.c.bf16 %v264, %v263
  %v272 = vpack.c.bf16 %v265, %v265
  %v273 = vld [vmem:[%s3] sm:$0xff]
  %v274 = vld [vmem:[%s3 + $0x8] sm:$0xff]
  %v275 = vld [vmem:[%s3 + $0x10] sm:$0xff]
  %v276 = vld [vmem:[%s3 + $0x18] sm:$0xff]
  %v277 = vld [vmem:[%s3 + $0x20] sm:$0xff]
  %v278 = vld [vmem:[%s3 + $0x28] sm:$0xff]
  %v279 = vld [vmem:[%s3 + $0x30] sm:$0xff]
  %v280 = vld [vmem:[%s3 + $0x38] sm:$0xff]
  %v281 = vld [vmem:[%s3 + $0x40] sm:$0xff]
  %v282 = vld [vmem:[%s3 + $0x48] sm:$0xff]
  %v283 = vld [vmem:[%s3 + $0x50] sm:$0xff]
  %v284 = vld [vmem:[%s3 + $0x58] sm:$0xff]
  %v285 = vld [vmem:[%s3 + $0x60] sm:$0xff]
  %v286 = vld [vmem:[%s3 + $0x68] sm:$0xff]
  %v287 = vld [vmem:[%s3 + $0x70] sm:$0xff]
  %v288 = vld [vmem:[%s3 + $0x78] sm:$0xff]
  %v289 = vld [vmem:[%s4] sm:$0x3]
  %v291 = vlaneseq
  %v292 = vshrl.u32 %v291, 7
  %v293 = vsub.s32 0, %v292
  %v294 = vrot.slane %v289, %v293
  %v295 = vlaneseq
  %v296 = vshrl.u32 %v295, 7
  %v297 = vsub.s32 1, %v296
  %v298 = vrot.slane %v289, %v297
  %v317 = vunpack.c.l.b16 %v273
  %v318 = vunpack.c.h.b16 %v273
  %v319 = vunpack.c.l.b16 %v274
  %v320 = vunpack.c.h.b16 %v274
  %v321 = vunpack.c.l.b16 %v275
  %v322 = vunpack.c.h.b16 %v275
  %v323 = vunpack.c.l.b16 %v276
  %v324 = vunpack.c.h.b16 %v276
  %v325 = vunpack.c.l.b16 %v277
  %v326 = vunpack.c.h.b16 %v277
  %v327 = vunpack.c.l.b16 %v278
  %v328 = vunpack.c.h.b16 %v278
  %v329 = vunpack.c.l.b16 %v279
  %v330 = vunpack.c.h.b16 %v279
  %v331 = vunpack.c.l.b16 %v280
  %v332 = vunpack.c.h.b16 %v280
  %v333 = vunpack.c.l.b16 %v281
  %v334 = vunpack.c.h.b16 %v281
  %v335 = vunpack.c.l.b16 %v282
  %v336 = vunpack.c.h.b16 %v282
  %v337 = vunpack.c.l.b16 %v283
  %v338 = vunpack.c.h.b16 %v283
  %v339 = vunpack.c.l.b16 %v284
  %v340 = vunpack.c.h.b16 %v284
  %v341 = vunpack.c.l.b16 %v285
  %v342 = vunpack.c.h.b16 %v285
  %v343 = vunpack.c.l.b16 %v286
  %v344 = vunpack.c.h.b16 %v286
  %v345 = vunpack.c.l.b16 %v287
  %v346 = vunpack.c.h.b16 %v287
  %v347 = vunpack.c.l.b16 %v288
  %v348 = vunpack.c.h.b16 %v288
  %v349 = vpack.c.b16 %v319, %v317
  %v350 = vpack.c.b16 %v320, %v318
  %v351 = vpack.c.b16 %v323, %v321
  %v352 = vpack.c.b16 %v324, %v322
  %v353 = vpack.c.b16 %v327, %v325
  %v354 = vpack.c.b16 %v328, %v326
  %v355 = vpack.c.b16 %v331, %v329
  %v356 = vpack.c.b16 %v332, %v330
  %v357 = vpack.c.b16 %v335, %v333
  %v358 = vpack.c.b16 %v336, %v334
  %v359 = vpack.c.b16 %v339, %v337
  %v360 = vpack.c.b16 %v340, %v338
  %v361 = vpack.c.b16 %v343, %v341
  %v362 = vpack.c.b16 %v344, %v342
  %v363 = vpack.c.b16 %v347, %v345
  %v364 = vpack.c.b16 %v348, %v346
  %381 = vmatprep.subr.bf16.mxu0 %v350
  %382 = vmatpush1.bf16.msra.mxu0 %v349
  %383 = vmatprep.subr.bf16.mxu0 %v352
  %384 = vmatpush1.bf16.msra.mxu0 %v351
  %385 = vmatprep.subr.bf16.mxu0 %v354
  %386 = vmatpush1.bf16.msra.mxu0 %v353
  %387 = vmatprep.subr.bf16.mxu0 %v356
  %388 = vmatpush1.bf16.msra.mxu0 %v355
  %389 = vmatprep.subr.bf16.mxu0 %v358
  %390 = vmatpush1.bf16.msra.mxu0 %v357
  %391 = vmatprep.subr.bf16.mxu0 %v360
  %392 = vmatpush1.bf16.msra.mxu0 %v359
  %393 = vmatprep.subr.bf16.mxu0 %v362
  %394 = vmatpush1.bf16.msra.mxu0 %v361
  %395 = vmatprep.subr.bf16.mxu0 %v364
  %396 = vmatpush1.bf16.msra.mxu0 %v363
  %397 = vmatprep.subr.bf16.mxu0 0
  %398 = vmatpush1.bf16.msra.mxu0 0
  %399 = vmatprep.subr.bf16.mxu0 0
  %400 = vmatpush1.bf16.msra.mxu0 0
  %401 = vmatprep.subr.bf16.mxu0 0
  %402 = vmatpush1.bf16.msra.mxu0 0
  %403 = vmatprep.subr.bf16.mxu0 0
  %404 = vmatpush1.bf16.msra.mxu0 0
  %405 = vmatprep.subr.bf16.mxu0 0
  %406 = vmatpush1.bf16.msra.mxu0 0
  %407 = vmatprep.subr.bf16.mxu0 0
  %408 = vmatpush1.bf16.msra.mxu0 0
  %409 = vmatprep.subr.bf16.mxu0 0
  %410 = vmatpush1.bf16.msra.mxu0 0
  %411 = vmatprep.subr.bf16.mxu0 0
  %412 = vmatpush1.bf16.msra.mxu0 0
  %413 = vmatprep.mubr.bf16.mxu0 0
  %414 = vmatmul.mubr.bf16.gmra.mrb[0].mxu0 %v266
  %v415 = vpop.f32.mrb[0].mxu0
  %v416 = vadd.f32 %v294, %v415
  %v417 = vpop.f32.mrb[0].mxu0
  %v418 = vadd.f32 %v298, %v417
  %v419 = vpop.f32.mrb[0].mxu0
  %v420 = vadd.f32 %v294, %v419
  %v421 = vpop.f32.mrb[0].mxu0
  %v422 = vadd.f32 %v298, %v421
  %423 = vmatprep.mubr.bf16.mxu0 0
  %424 = vmatmul.mubr.bf16.gmra.mrb[0].mxu0 %v267
  %v425 = vpop.f32.mrb[0].mxu0
  %v426 = vadd.f32 %v294, %v425
  %v427 = vpop.f32.mrb[0].mxu0
  %v428 = vadd.f32 %v298, %v427
  %v429 = vpop.f32.mrb[0].mxu0
  %v430 = vadd.f32 %v294, %v429
  %v431 = vpop.f32.mrb[0].mxu0
  %v432 = vadd.f32 %v298, %v431
  %433 = vmatprep.mubr.bf16.mxu0 0
  %434 = vmatmul.mubr.bf16.gmra.mrb[0].mxu0 %v268
  %v435 = vpop.f32.mrb[0].mxu0
  %v436 = vadd.f32 %v294, %v435
  %v437 = vpop.f32.mrb[0].mxu0
  %v438 = vadd.f32 %v298, %v437
  %v439 = vpop.f32.mrb[0].mxu0
  %v440 = vadd.f32 %v294, %v439
  %v441 = vpop.f32.mrb[0].mxu0
  %v442 = vadd.f32 %v298, %v441
  %443 = vmatprep.mubr.bf16.mxu0 0
  %444 = vmatmul.mubr.bf16.gmra.mrb[0].mxu0 %v269
  %v445 = vpop.f32.mrb[0].mxu0
  %v446 = vadd.f32 %v294, %v445
  %v447 = vpop.f32.mrb[0].mxu0
  %v448 = vadd.f32 %v298, %v447
  %v449 = vpop.f32.mrb[0].mxu0
  %v450 = vadd.f32 %v294, %v449
  %v451 = vpop.f32.mrb[0].mxu0
  %v452 = vadd.f32 %v298, %v451
  %453 = vmatprep.mubr.bf16.mxu0 0
  %454 = vmatmul.mubr.bf16.gmra.mrb[0].mxu0 %v270
  %v455 = vpop.f32.mrb[0].mxu0
  %v456 = vadd.f32 %v294, %v455
  %v457 = vpop.f32.mrb[0].mxu0
  %v458 = vadd.f32 %v298, %v457
  %v459 = vpop.f32.mrb[0].mxu0
  %v460 = vadd.f32 %v294, %v459
  %v461 = vpop.f32.mrb[0].mxu0
  %v462 = vadd.f32 %v298, %v461
  %463 = vmatprep.mubr.bf16.mxu0 0
  %464 = vmatmul.mubr.bf16.gmra.mrb[0].mxu0 %v271
  %v465 = vpop.f32.mrb[0].mxu0
  %v466 = vadd.f32 %v294, %v465
  %v467 = vpop.f32.mrb[0].mxu0
  %v468 = vadd.f32 %v298, %v467
  %v469 = vpop.f32.mrb[0].mxu0
  %v470 = vadd.f32 %v294, %v469
  %v471 = vpop.f32.mrb[0].mxu0
  %v472 = vadd.f32 %v298, %v471
  %473 = vmatprep.mubr.bf16.mxu0 0
  %474 = vmatmul.mubr.bf16.gmra.mrb[0].mxu0 %v272
  %v475 = vpop.f32.mrb[0].mxu0
  %v476 = vadd.f32 %v294, %v475
  %v477 = vpop.f32.mrb[0].mxu0
  %v478 = vadd.f32 %v298, %v477
  %v479 = vpop.f32.mrb[0].mxu0
  %v480 = vpop.f32.mrb[0].mxu0
  %481 = vdwg.mxu0
  %v482 = vlaneseq
  %v483 = vand.u32 %v482, 127
  %v484 = vadd.s32 %v483, 128
  %vm485 = vcmp.ge.s32.totalorder %v483, 144
  %vm486 = vcmp.ge.s32.totalorder %v484, 144
  %v487 = vsel %vm485, 1, 0
  %v488 = vsel %vm486, 1, 0
  %v489 = vcvt.s32.f32 %v487
  %v490 = vcvt.s32.f32 %v488
  %v491 = vmul.f32 %v416, %v489
  %v492 = vmul.f32 %v418, %v490
  %v493 = vmul.f32 %v420, %v489
  %v494 = vmul.f32 %v422, %v490
  %v495 = vmul.f32 %v426, %v489
  %v496 = vmul.f32 %v428, %v490
  %v497 = vmul.f32 %v430, %v489
  %v498 = vmul.f32 %v432, %v490
  %v499 = vmul.f32 %v436, %v489
  %v500 = vmul.f32 %v438, %v490
  %v501 = vmul.f32 %v440, %v489
  %v502 = vmul.f32 %v442, %v490
  %v503 = vmul.f32 %v446, %v489
  %v504 = vmul.f32 %v448, %v490
  %v505 = vmul.f32 %v450, %v489
  %v506 = vmul.f32 %v452, %v490
  %v507 = vmul.f32 %v456, %v489
  %v508 = vmul.f32 %v458, %v490
  %v509 = vmul.f32 %v460, %v489
  %v510 = vmul.f32 %v462, %v490
  %v511 = vmul.f32 %v466, %v489
  %v512 = vmul.f32 %v468, %v490
  %v513 = vmul.f32 %v470, %v489
  %v514 = vmul.f32 %v472, %v490
  %v515 = vmul.f32 %v476, %v489
  %v516 = vmul.f32 %v478, %v490
  %v517 = vmax.f32 %v416, %v491
  %v518 = vmax.f32 %v418, %v492
  %v519 = vmax.f32 %v420, %v493
  %v520 = vmax.f32 %v422, %v494
  %v521 = vmax.f32 %v426, %v495
  %v522 = vmax.f32 %v428, %v496
  %v523 = vmax.f32 %v430, %v497
  %v524 = vmax.f32 %v432, %v498
  %v525 = vmax.f32 %v436, %v499
  %v526 = vmax.f32 %v438, %v500
  %v527 = vmax.f32 %v440, %v501
  %v528 = vmax.f32 %v442, %v502
  %v529 = vmax.f32 %v446, %v503
  %v530 = vmax.f32 %v448, %v504
  %v531 = vmax.f32 %v450, %v505
  %v532 = vmax.f32 %v452, %v506
  %v533 = vmax.f32 %v456, %v507
  %v534 = vmax.f32 %v458, %v508
  %v535 = vmax.f32 %v460, %v509
  %v536 = vmax.f32 %v462, %v510
  %v537 = vmax.f32 %v466, %v511
  %v538 = vmax.f32 %v468, %v512
  %v539 = vmax.f32 %v470, %v513
  %v540 = vmax.f32 %v472, %v514
  %v541 = vmax.f32 %v476, %v515
  %v542 = vmax.f32 %v478, %v516
  %543 = vst [vmem:[#allocation2] sm:$0xff] 0.0
  %544 = vst [vmem:[#allocation2 + $0x8] sm:$0xff] 0.0
  %545 = vst [vmem:[#allocation2 + $0xe0] sm:$0xff] 0.0
  %546 = vst [vmem:[#allocation2 + $0xe8] sm:$0xff] 0.0
  %547 = vst [vmem:[#allocation2 + $0x10] sm:$0xff] %v517
  %548 = vst [vmem:[#allocation2 + $0x18] sm:$0xff] %v518
  %549 = vst [vmem:[#allocation2 + $0x20] sm:$0xff] %v519
  %550 = vst [vmem:[#allocation2 + $0x28] sm:$0xff] %v520
  %551 = vst [vmem:[#allocation2 + $0x30] sm:$0xff] %v521
  %552 = vst [vmem:[#allocation2 + $0x38] sm:$0xff] %v522
  %553 = vst [vmem:[#allocation2 + $0x40] sm:$0xff] %v523
  %554 = vst [vmem:[#allocation2 + $0x48] sm:$0xff] %v524
  %555 = vst [vmem:[#allocation2 + $0x50] sm:$0xff] %v525
  %556 = vst [vmem:[#allocation2 + $0x58] sm:$0xff] %v526
  %557 = vst [vmem:[#allocation2 + $0x60] sm:$0xff] %v527
  %558 = vst [vmem:[#allocation2 + $0x68] sm:$0xff] %v528
  %559 = vst [vmem:[#allocation2 + $0x70] sm:$0xff] %v529
  %560 = vst [vmem:[#allocation2 + $0x78] sm:$0xff] %v530
  %561 = vst [vmem:[#allocation2 + $0x80] sm:$0xff] %v531
  %562 = vst [vmem:[#allocation2 + $0x88] sm:$0xff] %v532
  %563 = vst [vmem:[#allocation2 + $0x90] sm:$0xff] %v533
  %564 = vst [vmem:[#allocation2 + $0x98] sm:$0xff] %v534
  %565 = vst [vmem:[#allocation2 + $0xa0] sm:$0xff] %v535
  %566 = vst [vmem:[#allocation2 + $0xa8] sm:$0xff] %v536
  %567 = vst [vmem:[#allocation2 + $0xb0] sm:$0xff] %v537
  %568 = vst [vmem:[#allocation2 + $0xb8] sm:$0xff] %v538
  %569 = vst [vmem:[#allocation2 + $0xc0] sm:$0xff] %v539
  %570 = vst [vmem:[#allocation2 + $0xc8] sm:$0xff] %v540
  %571 = vst [vmem:[#allocation2 + $0xd0] sm:$0xff] %v541
  %572 = vst [vmem:[#allocation2 + $0xd8] sm:$0xff] %v542
  %v573 = vld [vmem:[#allocation2] sm:$0xff]
  %v574 = vld [vmem:[#allocation2 + $0x8] sm:$0xff]
  %v575 = vld [vmem:[#allocation2 + $0x10] sm:$0xff]
  %v576 = vld [vmem:[#allocation2 + $0x18] sm:$0xff]
  %v577 = vld [vmem:[#allocation2 + $0x20] sm:$0xff]
  %v578 = vld [vmem:[#allocation2 + $0x28] sm:$0xff]
  %v579 = vld [vmem:[#allocation2 + $0x30] sm:$0xff]
  %v580 = vld [vmem:[#allocation2 + $0x38] sm:$0xff]
  %v581 = vld [vmem:[#allocation2 + $0x40] sm:$0xff]
  %v582 = vld [vmem:[#allocation2 + $0x48] sm:$0xff]
  %v583 = vld [vmem:[#allocation2 + $0x50] sm:$0xff]
  %v584 = vld [vmem:[#allocation2 + $0x58] sm:$0xff]
  %v585 = vld [vmem:[#allocation2 + $0x60] sm:$0xff]
  %v586 = vld [vmem:[#allocation2 + $0x68] sm:$0xff]
  %v587 = vld [vmem:[#allocation2 + $0x70] sm:$0xff]
  %v588 = vld [vmem:[#allocation2 + $0x78] sm:$0xff]
  %v589 = vld [vmem:[#allocation2 + $0x80] sm:$0xff]
  %v590 = vld [vmem:[#allocation2 + $0x88] sm:$0xff]
  %v591 = vld [vmem:[#allocation2 + $0x90] sm:$0xff]
  %v592 = vld [vmem:[#allocation2 + $0x98] sm:$0xff]
  %v593 = vld [vmem:[#allocation2 + $0xa0] sm:$0xff]
  %v594 = vld [vmem:[#allocation2 + $0xa8] sm:$0xff]
  %v595 = vld [vmem:[#allocation2 + $0xb0] sm:$0xff]
  %v596 = vld [vmem:[#allocation2 + $0xb8] sm:$0xff]
  %v597 = vld [vmem:[#allocation2 + $0xc0] sm:$0xff]
  %v598 = vld [vmem:[#allocation2 + $0xc8] sm:$0xff]
  %vm599 = vcmp.ge.s32.totalorder %v483, 0
  %vm600 = vcmp.ge.s32.totalorder %v484, 0
  %vm601 = vcmp.lt.s32.totalorder %v483, 16
  %vm602 = vcmp.lt.s32.totalorder %v484, 16
  %vm603 = vmand %vm599, %vm601
  %vm604 = vmand %vm600, %vm602
  %v605 = vsel %vm603, 1, 0
  %v606 = vsel %vm604, 1, 0
  %v607 = vcvt.s32.f32 %v605
  %v608 = vcvt.s32.f32 %v606
  %v609 = vmul.f32 %v573, %v607
  %v610 = vmul.f32 %v574, %v608
  %v611 = vmul.f32 %v575, %v607
  %v612 = vmul.f32 %v576, %v608
  %v613 = vmul.f32 %v577, %v607
  %v614 = vmul.f32 %v578, %v608
  %v615 = vmul.f32 %v579, %v607
  %v616 = vmul.f32 %v580, %v608
  %v617 = vmul.f32 %v581, %v607
  %v618 = vmul.f32 %v582, %v608
  %v619 = vmul.f32 %v583, %v607
  %v620 = vmul.f32 %v584, %v608
  %v621 = vmul.f32 %v585, %v607
  %v622 = vmul.f32 %v586, %v608
  %v623 = vmul.f32 %v587, %v607
  %v624 = vmul.f32 %v588, %v608
  %v625 = vmul.f32 %v589, %v607
  %v626 = vmul.f32 %v590, %v608
  %v627 = vmul.f32 %v591, %v607
  %v628 = vmul.f32 %v592, %v608
  %v629 = vmul.f32 %v593, %v607
  %v630 = vmul.f32 %v594, %v608
  %v631 = vmul.f32 %v595, %v607
  %v632 = vmul.f32 %v596, %v608
  %v633 = vmul.f32 %v597, %v607
  %v634 = vmul.f32 %v598, %v608
  %v635 = vadd.f32 %v609, 0.0
  %v636 = vadd.f32 %v610, 0.0
  %v637 = vadd.f32 %v611, 0.0
  %v638 = vadd.f32 %v612, 0.0
  %v639 = vadd.f32 %v613, 0.0
  %v640 = vadd.f32 %v614, 0.0
  %v641 = vadd.f32 %v615, 0.0
  %v642 = vadd.f32 %v616, 0.0
  %v643 = vadd.f32 %v617, 0.0
  %v644 = vadd.f32 %v618, 0.0
  %v645 = vadd.f32 %v619, 0.0
  %v646 = vadd.f32 %v620, 0.0
  %v647 = vadd.f32 %v621, 0.0
  %v648 = vadd.f32 %v622, 0.0
  %v649 = vadd.f32 %v623, 0.0
  %v650 = vadd.f32 %v624, 0.0
  %v651 = vadd.f32 %v625, 0.0
  %v652 = vadd.f32 %v626, 0.0
  %v653 = vadd.f32 %v627, 0.0
  %v654 = vadd.f32 %v628, 0.0
  %v655 = vadd.f32 %v629, 0.0
  %v656 = vadd.f32 %v630, 0.0
  %v657 = vadd.f32 %v631, 0.0
  %v658 = vadd.f32 %v632, 0.0
  %v659 = vadd.f32 %v633, 0.0
  %v660 = vadd.f32 %v634, 0.0
  %v661 = vld [vmem:[#allocation2] sm:$0xfe]
  %v662 = vld [vmem:[#allocation2 + $0x8] sm:$0xfe]
  %v663 = vld [vmem:[#allocation2 + $0xd0] sm:$0x1]
  %v664 = vld [vmem:[#allocation2 + $0xd8] sm:$0x1]
  %vm665 = vcmp.ge.s32.totalorder %v483, 16
  %vm666 = vcmp.ge.s32.totalorder %v484, 16
  %vm667 = vcmp.lt.s32.totalorder %v483, 32
  %vm668 = vcmp.lt.s32.totalorder %v484, 32
  %vm669 = vmand %vm665, %vm667
  %vm670 = vmand %vm666, %vm668
  %v671 = vsel %vm669, 1, 0
  %v672 = vsel %vm670, 1, 0
  %v673 = vcvt.s32.f32 %v671
  %v674 = vcvt.s32.f32 %v672
  %v675 = vmul.f32 %v661, %v673
  %v676 = vmul.f32 %v662, %v674
  %v677 = vmul.f32 %v575, %v673
  %v678 = vmul.f32 %v576, %v674
  %v679 = vmul.f32 %v577, %v673
  %v680 = vmul.f32 %v578, %v674
  %v681 = vmul.f32 %v579, %v673
  %v682 = vmul.f32 %v580, %v674
  %v683 = vmul.f32 %v581, %v673
  %v684 = vmul.f32 %v582, %v674
  %v685 = vmul.f32 %v583, %v673
  %v686 = vmul.f32 %v584, %v674
  %v687 = vmul.f32 %v585, %v673
  %v688 = vmul.f32 %v586, %v674
  %v689 = vmul.f32 %v587, %v673
  %v690 = vmul.f32 %v588, %v674
  %v691 = vmul.f32 %v589, %v673
  %v692 = vmul.f32 %v590, %v674
  %v693 = vmul.f32 %v591, %v673
  %v694 = vmul.f32 %v592, %v674
  %v695 = vmul.f32 %v593, %v673
  %v696 = vmul.f32 %v594, %v674
  %v697 = vmul.f32 %v595, %v673
  %v698 = vmul.f32 %v596, %v674
  %v699 = vmul.f32 %v597, %v673
  %v700 = vmul.f32 %v598, %v674
  %v701 = vmul.f32 %v663, %v673
  %v702 = vmul.f32 %v664, %v674
  %vm731 = vcmask 1046528
  %v732 = vrot.slane %v675, 1
  %v733 = vrot.slane %v677, 1
  %v734 = vsel %vm731, %v732, %v733
  %v735 = vrot.slane %v676, 1
  %v736 = vrot.slane %v678, 1
  %v737 = vsel %vm731, %v735, %v736
  %v738 = vrot.slane %v679, 1
  %v739 = vsel %vm731, %v733, %v738
  %v740 = vrot.slane %v680, 1
  %v741 = vsel %vm731, %v736, %v740
  %v742 = vrot.slane %v681, 1
  %v743 = vsel %vm731, %v738, %v742
  %v744 = vrot.slane %v682, 1
  %v745 = vsel %vm731, %v740, %v744
  %v746 = vrot.slane %v683, 1
  %v747 = vsel %vm731, %v742, %v746
  %v748 = vrot.slane %v684, 1
  %v749 = vsel %vm731, %v744, %v748
  %v750 = vrot.slane %v685, 1
  %v751 = vsel %vm731, %v746, %v750
  %v752 = vrot.slane %v686, 1
  %v753 = vsel %vm731, %v748, %v752
  %v754 = vrot.slane %v687, 1
  %v755 = vsel %vm731, %v750, %v754
  %v756 = vrot.slane %v688, 1
  %v757 = vsel %vm731, %v752, %v756
  %v758 = vrot.slane %v689, 1
  %v759 = vsel %vm731, %v754, %v758
  %v760 = vrot.slane %v690, 1
  %v761 = vsel %vm731, %v756, %v760
  %v762 = vrot.slane %v691, 1
  %v763 = vsel %vm731, %v758, %v762
  %v764 = vrot.slane %v692, 1
  %v765 = vsel %vm731, %v760, %v764
  %v766 = vrot.slane %v693, 1
  %v767 = vsel %vm731, %v762, %v766
  %v768 = vrot.slane %v694, 1
  %v769 = vsel %vm731, %v764, %v768
  %v770 = vrot.slane %v695, 1
  %v771 = vsel %vm731, %v766, %v770
  %v772 = vrot.slane %v696, 1
  %v773 = vsel %vm731, %v768, %v772
  %v774 = vrot.slane %v697, 1
  %v775 = vsel %vm731, %v770, %v774
  %v776 = vrot.slane %v698, 1
  %v777 = vsel %vm731, %v772, %v776
  %v778 = vrot.slane %v699, 1
  %v779 = vsel %vm731, %v774, %v778
  %v780 = vrot.slane %v700, 1
  %v781 = vsel %vm731, %v776, %v780
  %v782 = vrot.slane %v701, 1
  %v783 = vsel %vm731, %v778, %v782
  %v784 = vrot.slane %v702, 1
  %v785 = vsel %vm731, %v780, %v784
  %v812 = vadd.f32 %v635, %v734
  %v813 = vadd.f32 %v636, %v737
  %v814 = vadd.f32 %v637, %v739
  %v815 = vadd.f32 %v638, %v741
  %v816 = vadd.f32 %v639, %v743
  %v817 = vadd.f32 %v640, %v745
  %v818 = vadd.f32 %v641, %v747
  %v819 = vadd.f32 %v642, %v749
  %v820 = vadd.f32 %v643, %v751
  %v821 = vadd.f32 %v644, %v753
  %v822 = vadd.f32 %v645, %v755
  %v823 = vadd.f32 %v646, %v757
  %v824 = vadd.f32 %v647, %v759
  %v825 = vadd.f32 %v648, %v761
  %v826 = vadd.f32 %v649, %v763
  %v827 = vadd.f32 %v650, %v765
  %v828 = vadd.f32 %v651, %v767
  %v829 = vadd.f32 %v652, %v769
  %v830 = vadd.f32 %v653, %v771
  %v831 = vadd.f32 %v654, %v773
  %v832 = vadd.f32 %v655, %v775
  %v833 = vadd.f32 %v656, %v777
  %v834 = vadd.f32 %v657, %v779
  %v835 = vadd.f32 %v658, %v781
  %v836 = vadd.f32 %v659, %v783
  %v837 = vadd.f32 %v660, %v785
  %v838 = vld [vmem:[#allocation2] sm:$0xfc]
  %v839 = vld [vmem:[#allocation2 + $0x8] sm:$0xfc]
  %v840 = vld [vmem:[#allocation2 + $0xd0] sm:$0x3]
  %v841 = vld [vmem:[#allocation2 + $0xd8] sm:$0x3]
  %vm842 = vcmp.ge.s32.totalorder %v483, 32
  %vm843 = vcmp.ge.s32.totalorder %v484, 32
  %vm844 = vcmp.lt.s32.totalorder %v483, 48
  %vm845 = vcmp.lt.s32.totalorder %v484, 48
  %vm846 = vmand %vm842, %vm844
  %vm847 = vmand %vm843, %vm845
  %v848 = vsel %vm846, 1, 0
  %v849 = vsel %vm847, 1, 0
  %v850 = vcvt.s32.f32 %v848
  %v851 = vcvt.s32.f32 %v849
  %v852 = vmul.f32 %v838, %v850
  %v853 = vmul.f32 %v839, %v851
  %v854 = vmul.f32 %v575, %v850
  %v855 = vmul.f32 %v576, %v851
  %v856 = vmul.f32 %v577, %v850
  %v857 = vmul.f32 %v578, %v851
  %v858 = vmul.f32 %v579, %v850
  %v859 = vmul.f32 %v580, %v851
  %v860 = vmul.f32 %v581, %v850
  %v861 = vmul.f32 %v582, %v851
  %v862 = vmul.f32 %v583, %v850
  %v863 = vmul.f32 %v584, %v851
  %v864 = vmul.f32 %v585, %v850
  %v865 = vmul.f32 %v586, %v851
  %v866 = vmul.f32 %v587, %v850
  %v867 = vmul.f32 %v588, %v851
  %v868 = vmul.f32 %v589, %v850
  %v869 = vmul.f32 %v590, %v851
  %v870 = vmul.f32 %v591, %v850
  %v871 = vmul.f32 %v592, %v851
  %v872 = vmul.f32 %v593, %v850
  %v873 = vmul.f32 %v594, %v851
  %v874 = vmul.f32 %v595, %v850
  %v875 = vmul.f32 %v596, %v851
  %v876 = vmul.f32 %v597, %v850
  %v877 = vmul.f32 %v598, %v851
  %v878 = vmul.f32 %v840, %v850
  %v879 = vmul.f32 %v841, %v851
  %vm908 = vcmask 1045504
  %v909 = vrot.slane %v852, 2
  %v910 = vrot.slane %v854, 2
  %v911 = vsel %vm908, %v909, %v910
  %v912 = vrot.slane %v853, 2
  %v913 = vrot.slane %v855, 2
  %v914 = vsel %vm908, %v912, %v913
  %v915 = vrot.slane %v856, 2
  %v916 = vsel %vm908, %v910, %v915
  %v917 = vrot.slane %v857, 2
  %v918 = vsel %vm908, %v913, %v917
  %v919 = vrot.slane %v858, 2
  %v920 = vsel %vm908, %v915, %v919
  %v921 = vrot.slane %v859, 2
  %v922 = vsel %vm908, %v917, %v921
  %v923 = vrot.slane %v860, 2
  %v924 = vsel %vm908, %v919, %v923
  %v925 = vrot.slane %v861, 2
  %v926 = vsel %vm908, %v921, %v925
  %v927 = vrot.slane %v862, 2
  %v928 = vsel %vm908, %v923, %v927
  %v929 = vrot.slane %v863, 2
  %v930 = vsel %vm908, %v925, %v929
  %v931 = vrot.slane %v864, 2
  %v932 = vsel %vm908, %v927, %v931
  %v933 = vrot.slane %v865, 2
  %v934 = vsel %vm908, %v929, %v933
  %v935 = vrot.slane %v866, 2
  %v936 = vsel %vm908, %v931, %v935
  %v937 = vrot.slane %v867, 2
  %v938 = vsel %vm908, %v933, %v937
  %v939 = vrot.slane %v868, 2
  %v940 = vsel %vm908, %v935, %v939
  %v941 = vrot.slane %v869, 2
  %v942 = vsel %vm908, %v937, %v941
  %v943 = vrot.slane %v870, 2
  %v944 = vsel %vm908, %v939, %v943
  %v945 = vrot.slane %v871, 2
  %v946 = vsel %vm908, %v941, %v945
  %v947 = vrot.slane %v872, 2
  %v948 = vsel %vm908, %v943, %v947
  %v949 = vrot.slane %v873, 2
  %v950 = vsel %vm908, %v945, %v949
  %v951 = vrot.slane %v874, 2
  %v952 = vsel %vm908, %v947, %v951
  %v953 = vrot.slane %v875, 2
  %v954 = vsel %vm908, %v949, %v953
  %v955 = vrot.slane %v876, 2
  %v956 = vsel %vm908, %v951, %v955
  %v957 = vrot.slane %v877, 2
  %v958 = vsel %vm908, %v953, %v957
  %v959 = vrot.slane %v878, 2
  %v960 = vsel %vm908, %v955, %v959
  %v961 = vrot.slane %v879, 2
  %v962 = vsel %vm908, %v957, %v961
  %v989 = vadd.f32 %v812, %v911
  %v990 = vadd.f32 %v813, %v914
  %v991 = vadd.f32 %v814, %v916
  %v992 = vadd.f32 %v815, %v918
  %v993 = vadd.f32 %v816, %v920
  %v994 = vadd.f32 %v817, %v922
  %v995 = vadd.f32 %v818, %v924
  %v996 = vadd.f32 %v819, %v926
  %v997 = vadd.f32 %v820, %v928
  %v998 = vadd.f32 %v821, %v930
  %v999 = vadd.f32 %v822, %v932
  %v1000 = vadd.f32 %v823, %v934
  %v1001 = vadd.f32 %v824, %v936
  %v1002 = vadd.f32 %v825, %v938
  %v1003 = vadd.f32 %v826, %v940
  %v1004 = vadd.f32 %v827, %v942
  %v1005 = vadd.f32 %v828, %v944
  %v1006 = vadd.f32 %v829, %v946
  %v1007 = vadd.f32 %v830, %v948
  %v1008 = vadd.f32 %v831, %v950
  %v1009 = vadd.f32 %v832, %v952
  %v1010 = vadd.f32 %v833, %v954
  %v1011 = vadd.f32 %v834, %v956
  %v1012 = vadd.f32 %v835, %v958
  %v1013 = vadd.f32 %v836, %v960
  %v1014 = vadd.f32 %v837, %v962
  %v1015 = vld [vmem:[#allocation2] sm:$0x80]
  %v1016 = vld [vmem:[#allocation2 + $0x8] sm:$0x80]
  %v1017 = vld [vmem:[#allocation2 + $0xd0] sm:$0x7f]
  %v1018 = vld [vmem:[#allocation2 + $0xd8] sm:$0x7f]
  %vm1019 = vcmp.ge.s32.totalorder %v483, 48
  %vm1020 = vcmp.ge.s32.totalorder %v484, 48
  %vm1021 = vcmp.lt.s32.totalorder %v483, 64
  %vm1022 = vcmp.lt.s32.totalorder %v484, 64
  %vm1023 = vmand %vm1019, %vm1021
  %vm1024 = vmand %vm1020, %vm1022
  %v1025 = vsel %vm1023, 1, 0
  %v1026 = vsel %vm1024, 1, 0
  %v1027 = vcvt.s32.f32 %v1025
  %v1028 = vcvt.s32.f32 %v1026
  %v1029 = vmul.f32 %v1015, %v1027
  %v1030 = vmul.f32 %v1016, %v1028
  %v1031 = vmul.f32 %v575, %v1027
  %v1032 = vmul.f32 %v576, %v1028
  %v1033 = vmul.f32 %v577, %v1027
  %v1034 = vmul.f32 %v578, %v1028
  %v1035 = vmul.f32 %v579, %v1027
  %v1036 = vmul.f32 %v580, %v1028
  %v1037 = vmul.f32 %v581, %v1027
  %v1038 = vmul.f32 %v582, %v1028
  %v1039 = vmul.f32 %v583, %v1027
  %v1040 = vmul.f32 %v584, %v1028
  %v1041 = vmul.f32 %v585, %v1027
  %v1042 = vmul.f32 %v586, %v1028
  %v1043 = vmul.f32 %v587, %v1027
  %v1044 = vmul.f32 %v588, %v1028
  %v1045 = vmul.f32 %v589, %v1027
  %v1046 = vmul.f32 %v590, %v1028
  %v1047 = vmul.f32 %v591, %v1027
  %v1048 = vmul.f32 %v592, %v1028
  %v1049 = vmul.f32 %v593, %v1027
  %v1050 = vmul.f32 %v594, %v1028
  %v1051 = vmul.f32 %v595, %v1027
  %v1052 = vmul.f32 %v596, %v1028
  %v1053 = vmul.f32 %v597, %v1027
  %v1054 = vmul.f32 %v598, %v1028
  %v1055 = vmul.f32 %v1017, %v1027
  %v1056 = vmul.f32 %v1018, %v1028
  %vm1085 = vcmask 1040384
  %v1086 = vrot.slane %v1029, 7
  %v1087 = vrot.slane %v1031, 7
  %v1088 = vsel %vm1085, %v1086, %v1087
  %v1089 = vrot.slane %v1030, 7
  %v1090 = vrot.slane %v1032, 7
  %v1091 = vsel %vm1085, %v1089, %v1090
  %v1092 = vrot.slane %v1033, 7
  %v1093 = vsel %vm1085, %v1087, %v1092
  %v1094 = vrot.slane %v1034, 7
  %v1095 = vsel %vm1085, %v1090, %v1094
  %v1096 = vrot.slane %v1035, 7
  %v1097 = vsel %vm1085, %v1092, %v1096
  %v1098 = vrot.slane %v1036, 7
  %v1099 = vsel %vm1085, %v1094, %v1098
  %v1100 = vrot.slane %v1037, 7
  %v1101 = vsel %vm1085, %v1096, %v1100
  %v1102 = vrot.slane %v1038, 7
  %v1103 = vsel %vm1085, %v1098, %v1102
  %v1104 = vrot.slane %v1039, 7
  %v1105 = vsel %vm1085, %v1100, %v1104
  %v1106 = vrot.slane %v1040, 7
  %v1107 = vsel %vm1085, %v1102, %v1106
  %v1108 = vrot.slane %v1041, 7
  %v1109 = vsel %vm1085, %v1104, %v1108
  %v1110 = vrot.slane %v1042, 7
  %v1111 = vsel %vm1085, %v1106, %v1110
  %v1112 = vrot.slane %v1043, 7
  %v1113 = vsel %vm1085, %v1108, %v1112
  %v1114 = vrot.slane %v1044, 7
  %v1115 = vsel %vm1085, %v1110, %v1114
  %v1116 = vrot.slane %v1045, 7
  %v1117 = vsel %vm1085, %v1112, %v1116
  %v1118 = vrot.slane %v1046, 7
  %v1119 = vsel %vm1085, %v1114, %v1118
  %v1120 = vrot.slane %v1047, 7
  %v1121 = vsel %vm1085, %v1116, %v1120
  %v1122 = vrot.slane %v1048, 7
  %v1123 = vsel %vm1085, %v1118, %v1122
  %v1124 = vrot.slane %v1049, 7
  %v1125 = vsel %vm1085, %v1120, %v1124
  %v1126 = vrot.slane %v1050, 7
  %v1127 = vsel %vm1085, %v1122, %v1126
  %v1128 = vrot.slane %v1051, 7
  %v1129 = vsel %vm1085, %v1124, %v1128
  %v1130 = vrot.slane %v1052, 7
  %v1131 = vsel %vm1085, %v1126, %v1130
  %v1132 = vrot.slane %v1053, 7
  %v1133 = vsel %vm1085, %v1128, %v1132
  %v1134 = vrot.slane %v1054, 7
  %v1135 = vsel %vm1085, %v1130, %v1134
  %v1136 = vrot.slane %v1055, 7
  %v1137 = vsel %vm1085, %v1132, %v1136
  %v1138 = vrot.slane %v1056, 7
  %v1139 = vsel %vm1085, %v1134, %v1138
  %v1166 = vadd.f32 %v989, %v1088
  %v1167 = vadd.f32 %v990, %v1091
  %v1168 = vadd.f32 %v991, %v1093
  %v1169 = vadd.f32 %v992, %v1095
  %v1170 = vadd.f32 %v993, %v1097
  %v1171 = vadd.f32 %v994, %v1099
  %v1172 = vadd.f32 %v995, %v1101
  %v1173 = vadd.f32 %v996, %v1103
  %v1174 = vadd.f32 %v997, %v1105
  %v1175 = vadd.f32 %v998, %v1107
  %v1176 = vadd.f32 %v999, %v1109
  %v1177 = vadd.f32 %v1000, %v1111
  %v1178 = vadd.f32 %v1001, %v1113
  %v1179 = vadd.f32 %v1002, %v1115
  %v1180 = vadd.f32 %v1003, %v1117
  %v1181 = vadd.f32 %v1004, %v1119
  %v1182 = vadd.f32 %v1005, %v1121
  %v1183 = vadd.f32 %v1006, %v1123
  %v1184 = vadd.f32 %v1007, %v1125
  %v1185 = vadd.f32 %v1008, %v1127
  %v1186 = vadd.f32 %v1009, %v1129
  %v1187 = vadd.f32 %v1010, %v1131
  %v1188 = vadd.f32 %v1011, %v1133
  %v1189 = vadd.f32 %v1012, %v1135
  %v1190 = vadd.f32 %v1013, %v1137
  %v1191 = vadd.f32 %v1014, %v1139
  %v1192 = vld [vmem:[#allocation2 + $0xd0] sm:$0xff]
  %v1193 = vld [vmem:[#allocation2 + $0xd8] sm:$0xff]
  %vm1194 = vcmp.ge.s32.totalorder %v483, 64
  %vm1195 = vcmp.ge.s32.totalorder %v484, 64
  %vm1196 = vcmp.lt.s32.totalorder %v483, 80
  %vm1197 = vcmp.lt.s32.totalorder %v484, 80
  %vm1198 = vmand %vm1194, %vm1196
  %vm1199 = vmand %vm1195, %vm1197
  %v1200 = vsel %vm1198, 1, 0
  %v1201 = vsel %vm1199, 1, 0
  %v1202 = vcvt.s32.f32 %v1200
  %v1203 = vcvt.s32.f32 %v1201
  %v1204 = vmul.f32 %v575, %v1202
  %v1205 = vmul.f32 %v576, %v1203
  %v1206 = vmul.f32 %v577, %v1202
  %v1207 = vmul.f32 %v578, %v1203
  %v1208 = vmul.f32 %v579, %v1202
  %v1209 = vmul.f32 %v580, %v1203
  %v1210 = vmul.f32 %v581, %v1202
  %v1211 = vmul.f32 %v582, %v1203
  %v1212 = vmul.f32 %v583, %v1202
  %v1213 = vmul.f32 %v584, %v1203
  %v1214 = vmul.f32 %v585, %v1202
  %v1215 = vmul.f32 %v586, %v1203
  %v1216 = vmul.f32 %v587, %v1202
  %v1217 = vmul.f32 %v588, %v1203
  %v1218 = vmul.f32 %v589, %v1202
  %v1219 = vmul.f32 %v590, %v1203
  %v1220 = vmul.f32 %v591, %v1202
  %v1221 = vmul.f32 %v592, %v1203
  %v1222 = vmul.f32 %v593, %v1202
  %v1223 = vmul.f32 %v594, %v1203
  %v1224 = vmul.f32 %v595, %v1202
  %v1225 = vmul.f32 %v596, %v1203
  %v1226 = vmul.f32 %v597, %v1202
  %v1227 = vmul.f32 %v598, %v1203
  %v1228 = vmul.f32 %v1192, %v1202
  %v1229 = vmul.f32 %v1193, %v1203
  %v1230 = vadd.f32 %v1166, %v1204
  %v1231 = vadd.f32 %v1167, %v1205
  %v1232 = vadd.f32 %v1168, %v1206
  %v1233 = vadd.f32 %v1169, %v1207
  %v1234 = vadd.f32 %v1170, %v1208
  %v1235 = vadd.f32 %v1171, %v1209
  %v1236 = vadd.f32 %v1172, %v1210
  %v1237 = vadd.f32 %v1173, %v1211
  %v1238 = vadd.f32 %v1174, %v1212
  %v1239 = vadd.f32 %v1175, %v1213
  %v1240 = vadd.f32 %v1176, %v1214
  %v1241 = vadd.f32 %v1177, %v1215
  %v1242 = vadd.f32 %v1178, %v1216
  %v1243 = vadd.f32 %v1179, %v1217
  %v1244 = vadd.f32 %v1180, %v1218
  %v1245 = vadd.f32 %v1181, %v1219
  %v1246 = vadd.f32 %v1182, %v1220
  %v1247 = vadd.f32 %v1183, %v1221
  %v1248 = vadd.f32 %v1184, %v1222
  %v1249 = vadd.f32 %v1185, %v1223
  %v1250 = vadd.f32 %v1186, %v1224
  %v1251 = vadd.f32 %v1187, %v1225
  %v1252 = vadd.f32 %v1188, %v1226
  %v1253 = vadd.f32 %v1189, %v1227
  %v1254 = vadd.f32 %v1190, %v1228
  %v1255 = vadd.f32 %v1191, %v1229
  %v1256 = vld [vmem:[#allocation2 + $0x10] sm:$0xfe]
  %v1257 = vld [vmem:[#allocation2 + $0x18] sm:$0xfe]
  %v1258 = vld [vmem:[#allocation2 + $0x20] sm:$0xff]
  %v1259 = vld [vmem:[#allocation2 + $0x28] sm:$0xff]
  %v1260 = vld [vmem:[#allocation2 + $0x30] sm:$0xff]
  %v1261 = vld [vmem:[#allocation2 + $0x38] sm:$0xff]
  %v1262 = vld [vmem:[#allocation2 + $0x40] sm:$0xff]
  %v1263 = vld [vmem:[#allocation2 + $0x48] sm:$0xff]
  %v1264 = vld [vmem:[#allocation2 + $0x50] sm:$0xff]
  %v1265 = vld [vmem:[#allocation2 + $0x58] sm:$0xff]
  %v1266 = vld [vmem:[#allocation2 + $0x60] sm:$0xff]
  %v1267 = vld [vmem:[#allocation2 + $0x68] sm:$0xff]
  %v1268 = vld [vmem:[#allocation2 + $0x70] sm:$0xff]
  %v1269 = vld [vmem:[#allocation2 + $0x78] sm:$0xff]
  %v1270 = vld [vmem:[#allocation2 + $0x80] sm:$0xff]
  %v1271 = vld [vmem:[#allocation2 + $0x88] sm:$0xff]
  %v1272 = vld [vmem:[#allocation2 + $0x90] sm:$0xff]
  %v1273 = vld [vmem:[#allocation2 + $0x98] sm:$0xff]
  %v1274 = vld [vmem:[#allocation2 + $0xa0] sm:$0xff]
  %v1275 = vld [vmem:[#allocation2 + $0xa8] sm:$0xff]
  %v1276 = vld [vmem:[#allocation2 + $0xb0] sm:$0xff]
  %v1277 = vld [vmem:[#allocation2 + $0xb8] sm:$0xff]
  %v1278 = vld [vmem:[#allocation2 + $0xc0] sm:$0xff]
  %v1279 = vld [vmem:[#allocation2 + $0xc8] sm:$0xff]
  %v1280 = vld [vmem:[#allocation2 + $0xd0] sm:$0xff]
  %v1281 = vld [vmem:[#allocation2 + $0xd8] sm:$0xff]
  %v1282 = vld [vmem:[#allocation2 + $0xe0] sm:$0x1]
  %v1283 = vld [vmem:[#allocation2 + $0xe8] sm:$0x1]
  %vm1284 = vcmp.ge.s32.totalorder %v483, 80
  %vm1285 = vcmp.ge.s32.totalorder %v484, 80
  %vm1286 = vcmp.lt.s32.totalorder %v483, 96
  %vm1287 = vcmp.lt.s32.totalorder %v484, 96
  %vm1288 = vmand %vm1284, %vm1286
  %vm1289 = vmand %vm1285, %vm1287
  %v1290 = vsel %vm1288, 1, 0
  %v1291 = vsel %vm1289, 1, 0
  %v1292 = vcvt.s32.f32 %v1290
  %v1293 = vcvt.s32.f32 %v1291
  %v1294 = vmul.f32 %v1256, %v1292
  %v1295 = vmul.f32 %v1257, %v1293
  %v1296 = vmul.f32 %v1258, %v1292
  %v1297 = vmul.f32 %v1259, %v1293
  %v1298 = vmul.f32 %v1260, %v1292
  %v1299 = vmul.f32 %v1261, %v1293
  %v1300 = vmul.f32 %v1262, %v1292
  %v1301 = vmul.f32 %v1263, %v1293
  %v1302 = vmul.f32 %v1264, %v1292
  %v1303 = vmul.f32 %v1265, %v1293
  %v1304 = vmul.f32 %v1266, %v1292
  %v1305 = vmul.f32 %v1267, %v1293
  %v1306 = vmul.f32 %v1268, %v1292
  %v1307 = vmul.f32 %v1269, %v1293
  %v1308 = vmul.f32 %v1270, %v1292
  %v1309 = vmul.f32 %v1271, %v1293
  %v1310 = vmul.f32 %v1272, %v1292
  %v1311 = vmul.f32 %v1273, %v1293
  %v1312 = vmul.f32 %v1274, %v1292
  %v1313 = vmul.f32 %v1275, %v1293
  %v1314 = vmul.f32 %v1276, %v1292
  %v1315 = vmul.f32 %v1277, %v1293
  %v1316 = vmul.f32 %v1278, %v1292
  %v1317 = vmul.f32 %v1279, %v1293
  %v1318 = vmul.f32 %v1280, %v1292
  %v1319 = vmul.f32 %v1281, %v1293
  %v1320 = vmul.f32 %v1282, %v1292
  %v1321 = vmul.f32 %v1283, %v1293
  %v1350 = vrot.slane %v1294, 1
  %v1351 = vrot.slane %v1296, 1
  %v1352 = vsel %vm731, %v1350, %v1351
  %v1353 = vrot.slane %v1295, 1
  %v1354 = vrot.slane %v1297, 1
  %v1355 = vsel %vm731, %v1353, %v1354
  %v1356 = vrot.slane %v1298, 1
  %v1357 = vsel %vm731, %v1351, %v1356
  %v1358 = vrot.slane %v1299, 1
  %v1359 = vsel %vm731, %v1354, %v1358
  %v1360 = vrot.slane %v1300, 1
  %v1361 = vsel %vm731, %v1356, %v1360
  %v1362 = vrot.slane %v1301, 1
  %v1363 = vsel %vm731, %v1358, %v1362
  %v1364 = vrot.slane %v1302, 1
  %v1365 = vsel %vm731, %v1360, %v1364
  %v1366 = vrot.slane %v1303, 1
  %v1367 = vsel %vm731, %v1362, %v1366
  %v1368 = vrot.slane %v1304, 1
  %v1369 = vsel %vm731, %v1364, %v1368
  %v1370 = vrot.slane %v1305, 1
  %v1371 = vsel %vm731, %v1366, %v1370
  %v1372 = vrot.slane %v1306, 1
  %v1373 = vsel %vm731, %v1368, %v1372
  %v1374 = vrot.slane %v1307, 1
  %v1375 = vsel %vm731, %v1370, %v1374
  %v1376 = vrot.slane %v1308, 1
  %v1377 = vsel %vm731, %v1372, %v1376
  %v1378 = vrot.slane %v1309, 1
  %v1379 = vsel %vm731, %v1374, %v1378
  %v1380 = vrot.slane %v1310, 1
  %v1381 = vsel %vm731, %v1376, %v1380
  %v1382 = vrot.slane %v1311, 1
  %v1383 = vsel %vm731, %v1378, %v1382
  %v1384 = vrot.slane %v1312, 1
  %v1385 = vsel %vm731, %v1380, %v1384
  %v1386 = vrot.slane %v1313, 1
  %v1387 = vsel %vm731, %v1382, %v1386
  %v1388 = vrot.slane %v1314, 1
  %v1389 = vsel %vm731, %v1384, %v1388
  %v1390 = vrot.slane %v1315, 1
  %v1391 = vsel %vm731, %v1386, %v1390
  %v1392 = vrot.slane %v1316, 1
  %v1393 = vsel %vm731, %v1388, %v1392
  %v1394 = vrot.slane %v1317, 1
  %v1395 = vsel %vm731, %v1390, %v1394
  %v1396 = vrot.slane %v1318, 1
  %v1397 = vsel %vm731, %v1392, %v1396
  %v1398 = vrot.slane %v1319, 1
  %v1399 = vsel %vm731, %v1394, %v1398
  %v1400 = vrot.slane %v1320, 1
  %v1401 = vsel %vm731, %v1396, %v1400
  %v1402 = vrot.slane %v1321, 1
  %v1403 = vsel %vm731, %v1398, %v1402
  %v1430 = vadd.f32 %v1230, %v1352
  %v1431 = vadd.f32 %v1231, %v1355
  %v1432 = vadd.f32 %v1232, %v1357
  %v1433 = vadd.f32 %v1233, %v1359
  %v1434 = vadd.f32 %v1234, %v1361
  %v1435 = vadd.f32 %v1235, %v1363
  %v1436 = vadd.f32 %v1236, %v1365
  %v1437 = vadd.f32 %v1237, %v1367
  %v1438 = vadd.f32 %v1238, %v1369
  %v1439 = vadd.f32 %v1239, %v1371
  %v1440 = vadd.f32 %v1240, %v1373
  %v1441 = vadd.f32 %v1241, %v1375
  %v1442 = vadd.f32 %v1242, %v1377
  %v1443 = vadd.f32 %v1243, %v1379
  %v1444 = vadd.f32 %v1244, %v1381
  %v1445 = vadd.f32 %v1245, %v1383
  %v1446 = vadd.f32 %v1246, %v1385
  %v1447 = vadd.f32 %v1247, %v1387
  %v1448 = vadd.f32 %v1248, %v1389
  %v1449 = vadd.f32 %v1249, %v1391
  %v1450 = vadd.f32 %v1250, %v1393
  %v1451 = vadd.f32 %v1251, %v1395
  %v1452 = vadd.f32 %v1252, %v1397
  %v1453 = vadd.f32 %v1253, %v1399
  %v1454 = vadd.f32 %v1254, %v1401
  %v1455 = vadd.f32 %v1255, %v1403
  %v1456 = vld [vmem:[#allocation2 + $0x10] sm:$0xc0]
  %v1457 = vld [vmem:[#allocation2 + $0x18] sm:$0xc0]
  %v1458 = vld [vmem:[#allocation2 + $0xe0] sm:$0x3f]
  %v1459 = vld [vmem:[#allocation2 + $0xe8] sm:$0x3f]
  %vm1460 = vcmp.ge.s32.totalorder %v483, 96
  %vm1461 = vcmp.ge.s32.totalorder %v484, 96
  %vm1462 = vcmp.lt.s32.totalorder %v483, 112
  %vm1463 = vcmp.lt.s32.totalorder %v484, 112
  %vm1464 = vmand %vm1460, %vm1462
  %vm1465 = vmand %vm1461, %vm1463
  %v1466 = vsel %vm1464, 1, 0
  %v1467 = vsel %vm1465, 1, 0
  %v1468 = vcvt.s32.f32 %v1466
  %v1469 = vcvt.s32.f32 %v1467
  %v1470 = vmul.f32 %v1456, %v1468
  %v1471 = vmul.f32 %v1457, %v1469
  %v1472 = vmul.f32 %v1258, %v1468
  %v1473 = vmul.f32 %v1259, %v1469
  %v1474 = vmul.f32 %v1260, %v1468
  %v1475 = vmul.f32 %v1261, %v1469
  %v1476 = vmul.f32 %v1262, %v1468
  %v1477 = vmul.f32 %v1263, %v1469
  %v1478 = vmul.f32 %v1264, %v1468
  %v1479 = vmul.f32 %v1265, %v1469
  %v1480 = vmul.f32 %v1266, %v1468
  %v1481 = vmul.f32 %v1267, %v1469
  %v1482 = vmul.f32 %v1268, %v1468
  %v1483 = vmul.f32 %v1269, %v1469
  %v1484 = vmul.f32 %v1270, %v1468
  %v1485 = vmul.f32 %v1271, %v1469
  %v1486 = vmul.f32 %v1272, %v1468
  %v1487 = vmul.f32 %v1273, %v1469
  %v1488 = vmul.f32 %v1274, %v1468
  %v1489 = vmul.f32 %v1275, %v1469
  %v1490 = vmul.f32 %v1276, %v1468
  %v1491 = vmul.f32 %v1277, %v1469
  %v1492 = vmul.f32 %v1278, %v1468
  %v1493 = vmul.f32 %v1279, %v1469
  %v1494 = vmul.f32 %v1280, %v1468
  %v1495 = vmul.f32 %v1281, %v1469
  %v1496 = vmul.f32 %v1458, %v1468
  %v1497 = vmul.f32 %v1459, %v1469
  %vm1526 = vcmask 1041408
  %v1527 = vrot.slane %v1470, 6
  %v1528 = vrot.slane %v1472, 6
  %v1529 = vsel %vm1526, %v1527, %v1528
  %v1530 = vrot.slane %v1471, 6
  %v1531 = vrot.slane %v1473, 6
  %v1532 = vsel %vm1526, %v1530, %v1531
  %v1533 = vrot.slane %v1474, 6
  %v1534 = vsel %vm1526, %v1528, %v1533
  %v1535 = vrot.slane %v1475, 6
  %v1536 = vsel %vm1526, %v1531, %v1535
  %v1537 = vrot.slane %v1476, 6
  %v1538 = vsel %vm1526, %v1533, %v1537
  %v1539 = vrot.slane %v1477, 6
  %v1540 = vsel %vm1526, %v1535, %v1539
  %v1541 = vrot.slane %v1478, 6
  %v1542 = vsel %vm1526, %v1537, %v1541
  %v1543 = vrot.slane %v1479, 6
  %v1544 = vsel %vm1526, %v1539, %v1543
  %v1545 = vrot.slane %v1480, 6
  %v1546 = vsel %vm1526, %v1541, %v1545
  %v1547 = vrot.slane %v1481, 6
  %v1548 = vsel %vm1526, %v1543, %v1547
  %v1549 = vrot.slane %v1482, 6
  %v1550 = vsel %vm1526, %v1545, %v1549
  %v1551 = vrot.slane %v1483, 6
  %v1552 = vsel %vm1526, %v1547, %v1551
  %v1553 = vrot.slane %v1484, 6
  %v1554 = vsel %vm1526, %v1549, %v1553
  %v1555 = vrot.slane %v1485, 6
  %v1556 = vsel %vm1526, %v1551, %v1555
  %v1557 = vrot.slane %v1486, 6
  %v1558 = vsel %vm1526, %v1553, %v1557
  %v1559 = vrot.slane %v1487, 6
  %v1560 = vsel %vm1526, %v1555, %v1559
  %v1561 = vrot.slane %v1488, 6
  %v1562 = vsel %vm1526, %v1557, %v1561
  %v1563 = vrot.slane %v1489, 6
  %v1564 = vsel %vm1526, %v1559, %v1563
  %v1565 = vrot.slane %v1490, 6
  %v1566 = vsel %vm1526, %v1561, %v1565
  %v1567 = vrot.slane %v1491, 6
  %v1568 = vsel %vm1526, %v1563, %v1567
  %v1569 = vrot.slane %v1492, 6
  %v1570 = vsel %vm1526, %v1565, %v1569
  %v1571 = vrot.slane %v1493, 6
  %v1572 = vsel %vm1526, %v1567, %v1571
  %v1573 = vrot.slane %v1494, 6
  %v1574 = vsel %vm1526, %v1569, %v1573
  %v1575 = vrot.slane %v1495, 6
  %v1576 = vsel %vm1526, %v1571, %v1575
  %v1577 = vrot.slane %v1496, 6
  %v1578 = vsel %vm1526, %v1573, %v1577
  %v1579 = vrot.slane %v1497, 6
  %v1580 = vsel %vm1526, %v1575, %v1579
  %v1607 = vadd.f32 %v1430, %v1529
  %v1608 = vadd.f32 %v1431, %v1532
  %v1609 = vadd.f32 %v1432, %v1534
  %v1610 = vadd.f32 %v1433, %v1536
  %v1611 = vadd.f32 %v1434, %v1538
  %v1612 = vadd.f32 %v1435, %v1540
  %v1613 = vadd.f32 %v1436, %v1542
  %v1614 = vadd.f32 %v1437, %v1544
  %v1615 = vadd.f32 %v1438, %v1546
  %v1616 = vadd.f32 %v1439, %v1548
  %v1617 = vadd.f32 %v1440, %v1550
  %v1618 = vadd.f32 %v1441, %v1552
  %v1619 = vadd.f32 %v1442, %v1554
  %v1620 = vadd.f32 %v1443, %v1556
  %v1621 = vadd.f32 %v1444, %v1558
  %v1622 = vadd.f32 %v1445, %v1560
  %v1623 = vadd.f32 %v1446, %v1562
  %v1624 = vadd.f32 %v1447, %v1564
  %v1625 = vadd.f32 %v1448, %v1566
  %v1626 = vadd.f32 %v1449, %v1568
  %v1627 = vadd.f32 %v1450, %v1570
  %v1628 = vadd.f32 %v1451, %v1572
  %v1629 = vadd.f32 %v1452, %v1574
  %v1630 = vadd.f32 %v1453, %v1576
  %v1631 = vadd.f32 %v1454, %v1578
  %v1632 = vadd.f32 %v1455, %v1580
  %v1633 = vld [vmem:[#allocation2 + $0x10] sm:$0x80]
  %v1634 = vld [vmem:[#allocation2 + $0x18] sm:$0x80]
  %v1635 = vld [vmem:[#allocation2 + $0xe0] sm:$0x7f]
  %v1636 = vld [vmem:[#allocation2 + $0xe8] sm:$0x7f]
  %vm1637 = vcmp.ge.s32.totalorder %v483, 112
  %vm1638 = vcmp.ge.s32.totalorder %v484, 112
  %vm1639 = vcmp.lt.s32.totalorder %v483, 128
  %vm1640 = vcmp.lt.s32.totalorder %v484, 128
  %vm1641 = vmand %vm1637, %vm1639
  %vm1642 = vmand %vm1638, %vm1640
  %v1643 = vsel %vm1641, 1, 0
  %v1644 = vsel %vm1642, 1, 0
  %v1645 = vcvt.s32.f32 %v1643
  %v1646 = vcvt.s32.f32 %v1644
  %v1647 = vmul.f32 %v1633, %v1645
  %v1648 = vmul.f32 %v1634, %v1646
  %v1649 = vmul.f32 %v1258, %v1645
  %v1650 = vmul.f32 %v1259, %v1646
  %v1651 = vmul.f32 %v1260, %v1645
  %v1652 = vmul.f32 %v1261, %v1646
  %v1653 = vmul.f32 %v1262, %v1645
  %v1654 = vmul.f32 %v1263, %v1646
  %v1655 = vmul.f32 %v1264, %v1645
  %v1656 = vmul.f32 %v1265, %v1646
  %v1657 = vmul.f32 %v1266, %v1645
  %v1658 = vmul.f32 %v1267, %v1646
  %v1659 = vmul.f32 %v1268, %v1645
  %v1660 = vmul.f32 %v1269, %v1646
  %v1661 = vmul.f32 %v1270, %v1645
  %v1662 = vmul.f32 %v1271, %v1646
  %v1663 = vmul.f32 %v1272, %v1645
  %v1664 = vmul.f32 %v1273, %v1646
  %v1665 = vmul.f32 %v1274, %v1645
  %v1666 = vmul.f32 %v1275, %v1646
  %v1667 = vmul.f32 %v1276, %v1645
  %v1668 = vmul.f32 %v1277, %v1646
  %v1669 = vmul.f32 %v1278, %v1645
  %v1670 = vmul.f32 %v1279, %v1646
  %v1671 = vmul.f32 %v1280, %v1645
  %v1672 = vmul.f32 %v1281, %v1646
  %v1673 = vmul.f32 %v1635, %v1645
  %v1674 = vmul.f32 %v1636, %v1646
  %v1703 = vrot.slane %v1647, 7
  %v1704 = vrot.slane %v1649, 7
  %v1705 = vsel %vm1085, %v1703, %v1704
  %v1706 = vrot.slane %v1648, 7
  %v1707 = vrot.slane %v1650, 7
  %v1708 = vsel %vm1085, %v1706, %v1707
  %v1709 = vrot.slane %v1651, 7
  %v1710 = vsel %vm1085, %v1704, %v1709
  %v1711 = vrot.slane %v1652, 7
  %v1712 = vsel %vm1085, %v1707, %v1711
  %v1713 = vrot.slane %v1653, 7
  %v1714 = vsel %vm1085, %v1709, %v1713
  %v1715 = vrot.slane %v1654, 7
  %v1716 = vsel %vm1085, %v1711, %v1715
  %v1717 = vrot.slane %v1655, 7
  %v1718 = vsel %vm1085, %v1713, %v1717
  %v1719 = vrot.slane %v1656, 7
  %v1720 = vsel %vm1085, %v1715, %v1719
  %v1721 = vrot.slane %v1657, 7
  %v1722 = vsel %vm1085, %v1717, %v1721
  %v1723 = vrot.slane %v1658, 7
  %v1724 = vsel %vm1085, %v1719, %v1723
  %v1725 = vrot.slane %v1659, 7
  %v1726 = vsel %vm1085, %v1721, %v1725
  %v1727 = vrot.slane %v1660, 7
  %v1728 = vsel %vm1085, %v1723, %v1727
  %v1729 = vrot.slane %v1661, 7
  %v1730 = vsel %vm1085, %v1725, %v1729
  %v1731 = vrot.slane %v1662, 7
  %v1732 = vsel %vm1085, %v1727, %v1731
  %v1733 = vrot.slane %v1663, 7
  %v1734 = vsel %vm1085, %v1729, %v1733
  %v1735 = vrot.slane %v1664, 7
  %v1736 = vsel %vm1085, %v1731, %v1735
  %v1737 = vrot.slane %v1665, 7
  %v1738 = vsel %vm1085, %v1733, %v1737
  %v1739 = vrot.slane %v1666, 7
  %v1740 = vsel %vm1085, %v1735, %v1739
  %v1741 = vrot.slane %v1667, 7
  %v1742 = vsel %vm1085, %v1737, %v1741
  %v1743 = vrot.slane %v1668, 7
  %v1744 = vsel %vm1085, %v1739, %v1743
  %v1745 = vrot.slane %v1669, 7
  %v1746 = vsel %vm1085, %v1741, %v1745
  %v1747 = vrot.slane %v1670, 7
  %v1748 = vsel %vm1085, %v1743, %v1747
  %v1749 = vrot.slane %v1671, 7
  %v1750 = vsel %vm1085, %v1745, %v1749
  %v1751 = vrot.slane %v1672, 7
  %v1752 = vsel %vm1085, %v1747, %v1751
  %v1753 = vrot.slane %v1673, 7
  %v1754 = vsel %vm1085, %v1749, %v1753
  %v1755 = vrot.slane %v1674, 7
  %v1756 = vsel %vm1085, %v1751, %v1755
  %v1783 = vadd.f32 %v1607, %v1705
  %v1784 = vadd.f32 %v1608, %v1708
  %v1785 = vadd.f32 %v1609, %v1710
  %v1786 = vadd.f32 %v1610, %v1712
  %v1787 = vadd.f32 %v1611, %v1714
  %v1788 = vadd.f32 %v1612, %v1716
  %v1789 = vadd.f32 %v1613, %v1718
  %v1790 = vadd.f32 %v1614, %v1720
  %v1791 = vadd.f32 %v1615, %v1722
  %v1792 = vadd.f32 %v1616, %v1724
  %v1793 = vadd.f32 %v1617, %v1726
  %v1794 = vadd.f32 %v1618, %v1728
  %v1795 = vadd.f32 %v1619, %v1730
  %v1796 = vadd.f32 %v1620, %v1732
  %v1797 = vadd.f32 %v1621, %v1734
  %v1798 = vadd.f32 %v1622, %v1736
  %v1799 = vadd.f32 %v1623, %v1738
  %v1800 = vadd.f32 %v1624, %v1740
  %v1801 = vadd.f32 %v1625, %v1742
  %v1802 = vadd.f32 %v1626, %v1744
  %v1803 = vadd.f32 %v1627, %v1746
  %v1804 = vadd.f32 %v1628, %v1748
  %v1805 = vadd.f32 %v1629, %v1750
  %v1806 = vadd.f32 %v1630, %v1752
  %v1807 = vadd.f32 %v1631, %v1754
  %v1808 = vadd.f32 %v1632, %v1756
  %v1809 = vld [vmem:[#allocation2 + $0xe0] sm:$0xff]
  %v1810 = vld [vmem:[#allocation2 + $0xe8] sm:$0xff]
  %vm1811 = vcmp.ge.s32.totalorder %v483, 128
  %vm1812 = vcmp.ge.s32.totalorder %v484, 128
  %vm1813 = vcmp.lt.s32.totalorder %v483, 144
  %vm1814 = vcmp.lt.s32.totalorder %v484, 144
  %vm1815 = vmand %vm1811, %vm1813
  %vm1816 = vmand %vm1812, %vm1814
  %v1817 = vsel %vm1815, 1, 0
  %v1818 = vsel %vm1816, 1, 0
  %v1819 = vcvt.s32.f32 %v1817
  %v1820 = vcvt.s32.f32 %v1818
  %v1821 = vmul.f32 %v1258, %v1819
  %v1822 = vmul.f32 %v1259, %v1820
  %v1823 = vmul.f32 %v1260, %v1819
  %v1824 = vmul.f32 %v1261, %v1820
  %v1825 = vmul.f32 %v1262, %v1819
  %v1826 = vmul.f32 %v1263, %v1820
  %v1827 = vmul.f32 %v1264, %v1819
  %v1828 = vmul.f32 %v1265, %v1820
  %v1829 = vmul.f32 %v1266, %v1819
  %v1830 = vmul.f32 %v1267, %v1820
  %v1831 = vmul.f32 %v1268, %v1819
  %v1832 = vmul.f32 %v1269, %v1820
  %v1833 = vmul.f32 %v1270, %v1819
  %v1834 = vmul.f32 %v1271, %v1820
  %v1835 = vmul.f32 %v1272, %v1819
  %v1836 = vmul.f32 %v1273, %v1820
  %v1837 = vmul.f32 %v1274, %v1819
  %v1838 = vmul.f32 %v1275, %v1820
  %v1839 = vmul.f32 %v1276, %v1819
  %v1840 = vmul.f32 %v1277, %v1820
  %v1841 = vmul.f32 %v1278, %v1819
  %v1842 = vmul.f32 %v1279, %v1820
  %v1843 = vmul.f32 %v1280, %v1819
  %v1844 = vmul.f32 %v1281, %v1820
  %v1845 = vmul.f32 %v1809, %v1819
  %v1846 = vmul.f32 %v1810, %v1820
  %v1847 = vadd.f32 %v1783, %v1821
  %v1848 = vadd.f32 %v1784, %v1822
  %v1849 = vadd.f32 %v1785, %v1823
  %v1850 = vadd.f32 %v1786, %v1824
  %v1851 = vadd.f32 %v1787, %v1825
  %v1852 = vadd.f32 %v1788, %v1826
  %v1853 = vadd.f32 %v1789, %v1827
  %v1854 = vadd.f32 %v1790, %v1828
  %v1855 = vadd.f32 %v1791, %v1829
  %v1856 = vadd.f32 %v1792, %v1830
  %v1857 = vadd.f32 %v1793, %v1831
  %v1858 = vadd.f32 %v1794, %v1832
  %v1859 = vadd.f32 %v1795, %v1833
  %v1860 = vadd.f32 %v1796, %v1834
  %v1861 = vadd.f32 %v1797, %v1835
  %v1862 = vadd.f32 %v1798, %v1836
  %v1863 = vadd.f32 %v1799, %v1837
  %v1864 = vadd.f32 %v1800, %v1838
  %v1865 = vadd.f32 %v1801, %v1839
  %v1866 = vadd.f32 %v1802, %v1840
  %v1867 = vadd.f32 %v1803, %v1841
  %v1868 = vadd.f32 %v1804, %v1842
  %v1869 = vadd.f32 %v1805, %v1843
  %v1870 = vadd.f32 %v1806, %v1844
  %v1871 = vadd.f32 %v1807, %v1845
  %v1872 = vadd.f32 %v1808, %v1846
  %v1873 = vld [vmem:[%s9] sm:$0xff]
  %v1874 = vld [vmem:[%s9 + $0x8] sm:$0xff]
  %v1875 = vld [vmem:[%s9 + $0x10] sm:$0xff]
  %v1876 = vld [vmem:[%s9 + $0x18] sm:$0xff]
  %v1877 = vld [vmem:[%s9 + $0x20] sm:$0xff]
  %v1878 = vld [vmem:[%s9 + $0x28] sm:$0xff]
  %v1879 = vld [vmem:[%s9 + $0x30] sm:$0xff]
  %v1880 = vld [vmem:[%s9 + $0x38] sm:$0xff]
  %v1881 = vld [vmem:[%s9 + $0x40] sm:$0xff]
  %v1882 = vld [vmem:[%s9 + $0x48] sm:$0xff]
  %v1883 = vld [vmem:[%s9 + $0x50] sm:$0xff]
  %v1884 = vld [vmem:[%s9 + $0x58] sm:$0xff]
  %v1885 = vld [vmem:[%s9 + $0x60] sm:$0xff]
  %v1886 = vunpack.c.l.bf16 %v1873
  %v1887 = vunpack.c.h.bf16 %v1873
  %v1888 = vunpack.c.l.bf16 %v1874
  %v1889 = vunpack.c.h.bf16 %v1874
  %v1890 = vunpack.c.l.bf16 %v1875
  %v1891 = vunpack.c.h.bf16 %v1875
  %v1892 = vunpack.c.l.bf16 %v1876
  %v1893 = vunpack.c.h.bf16 %v1876
  %v1894 = vunpack.c.l.bf16 %v1877
  %v1895 = vunpack.c.h.bf16 %v1877
  %v1896 = vunpack.c.l.bf16 %v1878
  %v1897 = vunpack.c.h.bf16 %v1878
  %v1898 = vunpack.c.l.bf16 %v1879
  %v1899 = vunpack.c.h.bf16 %v1879
  %v1900 = vunpack.c.l.bf16 %v1880
  %v1901 = vunpack.c.h.bf16 %v1880
  %v1902 = vunpack.c.l.bf16 %v1881
  %v1903 = vunpack.c.h.bf16 %v1881
  %v1904 = vunpack.c.l.bf16 %v1882
  %v1905 = vunpack.c.h.bf16 %v1882
  %v1906 = vunpack.c.l.bf16 %v1883
  %v1907 = vunpack.c.h.bf16 %v1883
  %v1908 = vunpack.c.l.bf16 %v1884
  %v1909 = vunpack.c.h.bf16 %v1884
  %v1910 = vunpack.c.l.bf16 %v1885
  %v1911 = vunpack.c.h.bf16 %v1885
  %v1912 = vmul.f32 %v1847, %v1886
  %v1913 = vmul.f32 %v1848, %v1887
  %v1914 = vmul.f32 %v1849, %v1888
  %v1915 = vmul.f32 %v1850, %v1889
  %v1916 = vmul.f32 %v1851, %v1890
  %v1917 = vmul.f32 %v1852, %v1891
  %v1918 = vmul.f32 %v1853, %v1892
  %v1919 = vmul.f32 %v1854, %v1893
  %v1920 = vmul.f32 %v1855, %v1894
  %v1921 = vmul.f32 %v1856, %v1895
  %v1922 = vmul.f32 %v1857, %v1896
  %v1923 = vmul.f32 %v1858, %v1897
  %v1924 = vmul.f32 %v1859, %v1898
  %v1925 = vmul.f32 %v1860, %v1899
  %v1926 = vmul.f32 %v1861, %v1900
  %v1927 = vmul.f32 %v1862, %v1901
  %v1928 = vmul.f32 %v1863, %v1902
  %v1929 = vmul.f32 %v1864, %v1903
  %v1930 = vmul.f32 %v1865, %v1904
  %v1931 = vmul.f32 %v1866, %v1905
  %v1932 = vmul.f32 %v1867, %v1906
  %v1933 = vmul.f32 %v1868, %v1907
  %v1934 = vmul.f32 %v1869, %v1908
  %v1935 = vmul.f32 %v1870, %v1909
  %v1936 = vmul.f32 %v1871, %v1910
  %v1937 = vmul.f32 %v1872, %v1911
  %v1938 = vpack.c.bf16 %v1914, %v1912
  %v1939 = vpack.c.bf16 %v1915, %v1913
  %v1940 = vpack.c.bf16 %v1918, %v1916
  %v1941 = vpack.c.bf16 %v1919, %v1917
  %v1942 = vpack.c.bf16 %v1922, %v1920
  %v1943 = vpack.c.bf16 %v1923, %v1921
  %v1944 = vpack.c.bf16 %v1926, %v1924
  %v1945 = vpack.c.bf16 %v1927, %v1925
  %v1946 = vpack.c.bf16 %v1930, %v1928
  %v1947 = vpack.c.bf16 %v1931, %v1929
  %v1948 = vpack.c.bf16 %v1934, %v1932
  %v1949 = vpack.c.bf16 %v1935, %v1933
  %v1950 = vpack.c.bf16 %v1936, %v1936
  %v1951 = vpack.c.bf16 %v1937, %v1937
  %v1952 = vld [vmem:[%s5] sm:$0xf]
  %v1953 = vld [vmem:[%s5 + $0x4] sm:$0xf]
  %v1954 = vld [vmem:[%s5 + $0x8] sm:$0xf]
  %v1955 = vld [vmem:[%s5 + $0xc] sm:$0xf]
  %v1956 = vld [vmem:[%s5 + $0x10] sm:$0xf]
  %v1957 = vld [vmem:[%s5 + $0x14] sm:$0xf]
  %v1958 = vld [vmem:[%s5 + $0x18] sm:$0xf]
  %v1959 = vld [vmem:[%s5 + $0x1c] sm:$0xf]
  %v1960 = vld [vmem:[%s5 + $0x20] sm:$0xf]
  %v1961 = vld [vmem:[%s5 + $0x24] sm:$0xf]
  %v1962 = vld [vmem:[%s5 + $0x28] sm:$0xf]
  %v1963 = vld [vmem:[%s5 + $0x2c] sm:$0xf]
  %v1964 = vld [vmem:[%s5 + $0x30] sm:$0xf]
  %v1965 = vld [vmem:[%s5 + $0x34] sm:$0xf]
  %v1966 = vld [vmem:[%s5 + $0x38] sm:$0xf]
  %v1967 = vld [vmem:[%s5 + $0x3c] sm:$0xf]
  %v1968 = vld [vmem:[%s5 + $0x40] sm:$0xf]
  %v1969 = vld [vmem:[%s5 + $0x44] sm:$0xf]
  %v1970 = vld [vmem:[%s5 + $0x48] sm:$0xf]
  %v1971 = vld [vmem:[%s5 + $0x4c] sm:$0xf]
  %v1972 = vld [vmem:[%s5 + $0x50] sm:$0xf]
  %v1973 = vld [vmem:[%s5 + $0x54] sm:$0xf]
  %v1974 = vld [vmem:[%s5 + $0x58] sm:$0xf]
  %v1975 = vld [vmem:[%s5 + $0x5c] sm:$0xf]
  %v1976 = vld [vmem:[%s5 + $0x60] sm:$0xf]
  %v1977 = vld [vmem:[%s5 + $0x64] sm:$0xf]
  %v1978 = vld [vmem:[%s5 + $0x68] sm:$0xf]
  %v1979 = vld [vmem:[%s5 + $0x6c] sm:$0xf]
  %v1980 = vld [vmem:[%s5 + $0x70] sm:$0xf]
  %v1981 = vld [vmem:[%s5 + $0x74] sm:$0xf]
  %v1982 = vld [vmem:[%s5 + $0x78] sm:$0xf]
  %v1983 = vld [vmem:[%s5 + $0x7c] sm:$0xf]
  %v1984 = vld [vmem:[%s6] sm:$0x1]
  %v1986 = vlaneseq
  %v1987 = vshrl.u32 %v1986, 7
  %v1988 = vsub.s32 0, %v1987
  %v1989 = vrot.slane %v1984, %v1988
  %v2023 = vunpack.c.l.b16 %v1952
  %v2024 = vunpack.c.l.b16 %v1953
  %v2025 = vunpack.c.l.b16 %v1954
  %v2026 = vunpack.c.l.b16 %v1955
  %v2027 = vunpack.c.l.b16 %v1956
  %v2028 = vunpack.c.l.b16 %v1957
  %v2029 = vunpack.c.l.b16 %v1958
  %v2030 = vunpack.c.l.b16 %v1959
  %v2031 = vunpack.c.l.b16 %v1960
  %v2032 = vunpack.c.l.b16 %v1961
  %v2033 = vunpack.c.l.b16 %v1962
  %v2034 = vunpack.c.l.b16 %v1963
  %v2035 = vunpack.c.l.b16 %v1964
  %v2036 = vunpack.c.l.b16 %v1965
  %v2037 = vunpack.c.l.b16 %v1966
  %v2038 = vunpack.c.l.b16 %v1967
  %v2039 = vunpack.c.l.b16 %v1968
  %v2040 = vunpack.c.l.b16 %v1969
  %v2041 = vunpack.c.l.b16 %v1970
  %v2042 = vunpack.c.l.b16 %v1971
  %v2043 = vunpack.c.l.b16 %v1972
  %v2044 = vunpack.c.l.b16 %v1973
  %v2045 = vunpack.c.l.b16 %v1974
  %v2046 = vunpack.c.l.b16 %v1975
  %v2047 = vunpack.c.l.b16 %v1976
  %v2048 = vunpack.c.l.b16 %v1977
  %v2049 = vunpack.c.l.b16 %v1978
  %v2050 = vunpack.c.l.b16 %v1979
  %v2051 = vunpack.c.l.b16 %v1980
  %v2052 = vunpack.c.l.b16 %v1981
  %v2053 = vunpack.c.l.b16 %v1982
  %v2054 = vunpack.c.l.b16 %v1983
  %v2055 = vpack.c.b16 %v2024, %v2023
  %v2056 = vpack.c.b16 %v2026, %v2025
  %v2057 = vpack.c.b16 %v2028, %v2027
  %v2058 = vpack.c.b16 %v2030, %v2029
  %v2059 = vpack.c.b16 %v2032, %v2031
  %v2060 = vpack.c.b16 %v2034, %v2033
  %v2061 = vpack.c.b16 %v2036, %v2035
  %v2062 = vpack.c.b16 %v2038, %v2037
  %v2063 = vpack.c.b16 %v2040, %v2039
  %v2064 = vpack.c.b16 %v2042, %v2041
  %v2065 = vpack.c.b16 %v2044, %v2043
  %v2066 = vpack.c.b16 %v2046, %v2045
  %v2067 = vpack.c.b16 %v2048, %v2047
  %v2068 = vpack.c.b16 %v2050, %v2049
  %v2069 = vpack.c.b16 %v2052, %v2051
  %v2070 = vpack.c.b16 %v2054, %v2053
  %2087 = vmatprep.subr.bf16.mxu0 0
  %2088 = vmatpush1.bf16.msra.mxu0 %v2055
  %2089 = vmatprep.subr.bf16.mxu0 0
  %2090 = vmatpush1.bf16.msra.mxu0 %v2056
  %2091 = vmatprep.subr.bf16.mxu0 0
  %2092 = vmatpush1.bf16.msra.mxu0 %v2057
  %2093 = vmatprep.subr.bf16.mxu0 0
  %2094 = vmatpush1.bf16.msra.mxu0 %v2058
  %2095 = vmatprep.subr.bf16.mxu0 0
  %2096 = vmatpush1.bf16.msra.mxu0 %v2059
  %2097 = vmatprep.subr.bf16.mxu0 0
  %2098 = vmatpush1.bf16.msra.mxu0 %v2060
  %2099 = vmatprep.subr.bf16.mxu0 0
  %2100 = vmatpush1.bf16.msra.mxu0 %v2061
  %2101 = vmatprep.subr.bf16.mxu0 0
  %2102 = vmatpush1.bf16.msra.mxu0 %v2062
  %2103 = vmatprep.subr.bf16.mxu0 0
  %2104 = vmatpush1.bf16.msra.mxu0 %v2063
  %2105 = vmatprep.subr.bf16.mxu0 0
  %2106 = vmatpush1.bf16.msra.mxu0 %v2064
  %2107 = vmatprep.subr.bf16.mxu0 0
  %2108 = vmatpush1.bf16.msra.mxu0 %v2065
  %2109 = vmatprep.subr.bf16.mxu0 0
  %2110 = vmatpush1.bf16.msra.mxu0 %v2066
  %2111 = vmatprep.subr.bf16.mxu0 0
  %2112 = vmatpush1.bf16.msra.mxu0 %v2067
  %2113 = vmatprep.subr.bf16.mxu0 0
  %2114 = vmatpush1.bf16.msra.mxu0 %v2068
  %2115 = vmatprep.subr.bf16.mxu0 0
  %2116 = vmatpush1.bf16.msra.mxu0 %v2069
  %2117 = vmatprep.subr.bf16.mxu0 0
  %2118 = vmatpush1.bf16.msra.mxu0 %v2070
  %2119 = vmatprep.mubr.bf16.mxu0 %v1939
  %2120 = vmatmul.mubr.bf16.gmra.mrb[0].mxu0 %v1938
  %v2121 = vpop.f32.mrb[0].mxu0
  %v2122 = vadd.f32 %v1989, %v2121
  %v2123 = vpop.f32.mrb[0].mxu0
  %v2124 = vpop.f32.mrb[0].mxu0
  %v2125 = vadd.f32 %v1989, %v2124
  %v2126 = vpop.f32.mrb[0].mxu0
  %2127 = vmatprep.mubr.bf16.mxu0 %v1941
  %2128 = vmatmul.mubr.bf16.gmra.mrb[0].mxu0 %v1940
  %v2129 = vpop.f32.mrb[0].mxu0
  %v2130 = vadd.f32 %v1989, %v2129
  %v2131 = vpop.f32.mrb[0].mxu0
  %v2132 = vpop.f32.mrb[0].mxu0
  %v2133 = vadd.f32 %v1989, %v2132
  %v2134 = vpop.f32.mrb[0].mxu0
  %2135 = vmatprep.mubr.bf16.mxu0 %v1943
  %2136 = vmatmul.mubr.bf16.gmra.mrb[0].mxu0 %v1942
  %v2137 = vpop.f32.mrb[0].mxu0
  %v2138 = vadd.f32 %v1989, %v2137
  %v2139 = vpop.f32.mrb[0].mxu0
  %v2140 = vpop.f32.mrb[0].mxu0
  %v2141 = vadd.f32 %v1989, %v2140
  %v2142 = vpop.f32.mrb[0].mxu0
  %2143 = vmatprep.mubr.bf16.mxu0 %v1945
  %2144 = vmatmul.mubr.bf16.gmra.mrb[0].mxu0 %v1944
  %v2145 = vpop.f32.mrb[0].mxu0
  %v2146 = vadd.f32 %v1989, %v2145
  %v2147 = vpop.f32.mrb[0].mxu0
  %v2148 = vpop.f32.mrb[0].mxu0
  %v2149 = vadd.f32 %v1989, %v2148
  %v2150 = vpop.f32.mrb[0].mxu0
  %2151 = vmatprep.mubr.bf16.mxu0 %v1947
  %2152 = vmatmul.mubr.bf16.gmra.mrb[0].mxu0 %v1946
  %v2153 = vpop.f32.mrb[0].mxu0
  %v2154 = vadd.f32 %v1989, %v2153
  %v2155 = vpop.f32.mrb[0].mxu0
  %v2156 = vpop.f32.mrb[0].mxu0
  %v2157 = vadd.f32 %v1989, %v2156
  %v2158 = vpop.f32.mrb[0].mxu0
  %2159 = vmatprep.mubr.bf16.mxu0 %v1949
  %2160 = vmatmul.mubr.bf16.gmra.mrb[0].mxu0 %v1948
  %v2161 = vpop.f32.mrb[0].mxu0
  %v2162 = vadd.f32 %v1989, %v2161
  %v2163 = vpop.f32.mrb[0].mxu0
  %v2164 = vpop.f32.mrb[0].mxu0
  %v2165 = vadd.f32 %v1989, %v2164
  %v2166 = vpop.f32.mrb[0].mxu0
  %2167 = vmatprep.mubr.bf16.mxu0 %v1951
  %2168 = vmatmul.mubr.bf16.gmra.mrb[0].mxu0 %v1950
  %v2169 = vpop.f32.mrb[0].mxu0
  %v2170 = vadd.f32 %v1989, %v2169
  %v2171 = vpop.f32.mrb[0].mxu0
  %v2172 = vpop.f32.mrb[0].mxu0
  %v2173 = vpop.f32.mrb[0].mxu0
  %2174 = vdwg.mxu0
  %v2175 = vmax.f32 %v2122, 0.0
  %v2176 = vmax.f32 %v2125, 0.0
  %v2177 = vmax.f32 %v2130, 0.0
  %v2178 = vmax.f32 %v2133, 0.0
  %v2179 = vmax.f32 %v2138, 0.0
  %v2180 = vmax.f32 %v2141, 0.0
  %v2181 = vmax.f32 %v2146, 0.0
  %v2182 = vmax.f32 %v2149, 0.0
  %v2183 = vmax.f32 %v2154, 0.0
  %v2184 = vmax.f32 %v2157, 0.0
  %v2185 = vmax.f32 %v2162, 0.0
  %v2186 = vmax.f32 %v2165, 0.0
  %v2187 = vmax.f32 %v2170, 0.0
  %v2188 = vpack.c.bf16 %v2176, %v2175
  %v2189 = vpack.c.bf16 %v2178, %v2177
  %v2190 = vpack.c.bf16 %v2180, %v2179
  %v2191 = vpack.c.bf16 %v2182, %v2181
  %v2192 = vpack.c.bf16 %v2184, %v2183
  %v2193 = vpack.c.bf16 %v2186, %v2185
  %v2194 = vpack.c.bf16 %v2187, %v2187
  %v2195 = vld [vmem:[%s7] sm:$0xf]
  %v2196 = vld [vmem:[%s7 + $0x4] sm:$0xf]
  %v2197 = vld [vmem:[%s7 + $0x8] sm:$0xf]
  %v2198 = vld [vmem:[%s7 + $0xc] sm:$0xf]
  %v2199 = vld [vmem:[%s7 + $0x10] sm:$0xf]
  %v2200 = vld [vmem:[%s7 + $0x14] sm:$0xf]
  %v2201 = vld [vmem:[%s7 + $0x18] sm:$0xf]
  %v2202 = vld [vmem:[%s7 + $0x1c] sm:$0xf]
  %v2203 = vld [vmem:[%s7 + $0x20] sm:$0xf]
  %v2204 = vld [vmem:[%s7 + $0x24] sm:$0xf]
  %v2205 = vld [vmem:[%s7 + $0x28] sm:$0xf]
  %v2206 = vld [vmem:[%s7 + $0x2c] sm:$0xf]
  %v2207 = vld [vmem:[%s7 + $0x30] sm:$0xf]
  %v2208 = vld [vmem:[%s7 + $0x34] sm:$0xf]
  %v2209 = vld [vmem:[%s7 + $0x38] sm:$0xf]
  %v2210 = vld [vmem:[%s7 + $0x3c] sm:$0xf]
  %v2211 = vld [vmem:[%s8] sm:$0x1]
  %v2213 = vlaneseq
  %v2214 = vshrl.u32 %v2213, 7
  %v2215 = vsub.s32 0, %v2214
  %v2216 = vrot.slane %v2211, %v2215
  %v2234 = vunpack.c.l.b16 %v2195
  %v2235 = vunpack.c.l.b16 %v2196
  %v2236 = vunpack.c.l.b16 %v2197
  %v2237 = vunpack.c.l.b16 %v2198
  %v2238 = vunpack.c.l.b16 %v2199
  %v2239 = vunpack.c.l.b16 %v2200
  %v2240 = vunpack.c.l.b16 %v2201
  %v2241 = vunpack.c.l.b16 %v2202
  %v2242 = vunpack.c.l.b16 %v2203
  %v2243 = vunpack.c.l.b16 %v2204
  %v2244 = vunpack.c.l.b16 %v2205
  %v2245 = vunpack.c.l.b16 %v2206
  %v2246 = vunpack.c.l.b16 %v2207
  %v2247 = vunpack.c.l.b16 %v2208
  %v2248 = vunpack.c.l.b16 %v2209
  %v2249 = vunpack.c.l.b16 %v2210
  %v2250 = vpack.c.b16 %v2235, %v2234
  %v2251 = vpack.c.b16 %v2237, %v2236
  %v2252 = vpack.c.b16 %v2239, %v2238
  %v2253 = vpack.c.b16 %v2241, %v2240
  %v2254 = vpack.c.b16 %v2243, %v2242
  %v2255 = vpack.c.b16 %v2245, %v2244
  %v2256 = vpack.c.b16 %v2247, %v2246
  %v2257 = vpack.c.b16 %v2249, %v2248
  %2266 = vmatprep.subr.bf16.mxu0 0
  %2267 = vmatpush1.bf16.msra.mxu0 %v2250
  %2268 = vmatprep.subr.bf16.mxu0 0
  %2269 = vmatpush1.bf16.msra.mxu0 %v2251
  %2270 = vmatprep.subr.bf16.mxu0 0
  %2271 = vmatpush1.bf16.msra.mxu0 %v2252
  %2272 = vmatprep.subr.bf16.mxu0 0
  %2273 = vmatpush1.bf16.msra.mxu0 %v2253
  %2274 = vmatprep.subr.bf16.mxu0 0
  %2275 = vmatpush1.bf16.msra.mxu0 %v2254
  %2276 = vmatprep.subr.bf16.mxu0 0
  %2277 = vmatpush1.bf16.msra.mxu0 %v2255
  %2278 = vmatprep.subr.bf16.mxu0 0
  %2279 = vmatpush1.bf16.msra.mxu0 %v2256
  %2280 = vmatprep.subr.bf16.mxu0 0
  %2281 = vmatpush1.bf16.msra.mxu0 %v2257
  %2282 = vmatprep.subr.bf16.mxu0 0
  %2283 = vmatpush1.bf16.msra.mxu0 0
  %2284 = vmatprep.subr.bf16.mxu0 0
  %2285 = vmatpush1.bf16.msra.mxu0 0
  %2286 = vmatprep.subr.bf16.mxu0 0
  %2287 = vmatpush1.bf16.msra.mxu0 0
  %2288 = vmatprep.subr.bf16.mxu0 0
  %2289 = vmatpush1.bf16.msra.mxu0 0
  %2290 = vmatprep.subr.bf16.mxu0 0
  %2291 = vmatpush1.bf16.msra.mxu0 0
  %2292 = vmatprep.subr.bf16.mxu0 0
  %2293 = vmatpush1.bf16.msra.mxu0 0
  %2294 = vmatprep.subr.bf16.mxu0 0
  %2295 = vmatpush1.bf16.msra.mxu0 0
  %2296 = vmatprep.subr.bf16.mxu0 0
  %2297 = vmatpush1.bf16.msra.mxu0 0
  %2298 = vmatprep.mubr.bf16.mxu0 0
  %2299 = vmatmul.mubr.bf16.gmra.mrb[0].mxu0 %v2188
  %v2300 = vpop.f32.mrb[0].mxu0
  %v2301 = vadd.f32 %v2216, %v2300
  %v2302 = vpop.f32.mrb[0].mxu0
  %v2303 = vpop.f32.mrb[0].mxu0
  %v2304 = vadd.f32 %v2216, %v2303
  %v2305 = vpop.f32.mrb[0].mxu0
  %2306 = vmatprep.mubr.bf16.mxu0 0
  %2307 = vmatmul.mubr.bf16.gmra.mrb[0].mxu0 %v2189
  %v2308 = vpop.f32.mrb[0].mxu0
  %v2309 = vadd.f32 %v2216, %v2308
  %v2310 = vpop.f32.mrb[0].mxu0
  %v2311 = vpop.f32.mrb[0].mxu0
  %v2312 = vadd.f32 %v2216, %v2311
  %v2313 = vpop.f32.mrb[0].mxu0
  %2314 = vmatprep.mubr.bf16.mxu0 0
  %2315 = vmatmul.mubr.bf16.gmra.mrb[0].mxu0 %v2190
  %v2316 = vpop.f32.mrb[0].mxu0
  %v2317 = vadd.f32 %v2216, %v2316
  %v2318 = vpop.f32.mrb[0].mxu0
  %v2319 = vpop.f32.mrb[0].mxu0
  %v2320 = vadd.f32 %v2216, %v2319
  %v2321 = vpop.f32.mrb[0].mxu0
  %2322 = vmatprep.mubr.bf16.mxu0 0
  %2323 = vmatmul.mubr.bf16.gmra.mrb[0].mxu0 %v2191
  %v2324 = vpop.f32.mrb[0].mxu0
  %v2325 = vadd.f32 %v2216, %v2324
  %v2326 = vpop.f32.mrb[0].mxu0
  %v2327 = vpop.f32.mrb[0].mxu0
  %v2328 = vadd.f32 %v2216, %v2327
  %v2329 = vpop.f32.mrb[0].mxu0
  %2330 = vmatprep.mubr.bf16.mxu0 0
  %2331 = vmatmul.mubr.bf16.gmra.mrb[0].mxu0 %v2192
  %v2332 = vpop.f32.mrb[0].mxu0
  %v2333 = vadd.f32 %v2216, %v2332
  %v2334 = vpop.f32.mrb[0].mxu0
  %v2335 = vpop.f32.mrb[0].mxu0
  %v2336 = vadd.f32 %v2216, %v2335
  %v2337 = vpop.f32.mrb[0].mxu0
  %2338 = vmatprep.mubr.bf16.mxu0 0
  %2339 = vmatmul.mubr.bf16.gmra.mrb[0].mxu0 %v2193
  %v2340 = vpop.f32.mrb[0].mxu0
  %v2341 = vadd.f32 %v2216, %v2340
  %v2342 = vpop.f32.mrb[0].mxu0
  %v2343 = vpop.f32.mrb[0].mxu0
  %v2344 = vadd.f32 %v2216, %v2343
  %v2345 = vpop.f32.mrb[0].mxu0
  %2346 = vmatprep.mubr.bf16.mxu0 0
  %2347 = vmatmul.mubr.bf16.gmra.mrb[0].mxu0 %v2194
  %v2348 = vpop.f32.mrb[0].mxu0
  %v2349 = vadd.f32 %v2216, %v2348
  %v2350 = vpop.f32.mrb[0].mxu0
  %v2351 = vpop.f32.mrb[0].mxu0
  %v2352 = vpop.f32.mrb[0].mxu0
  %2353 = vdwg.mxu0
  %v2354 = vadd.f32 %v2301, %v576
  %v2355 = vadd.f32 %v2304, %v578
  %v2356 = vadd.f32 %v2309, %v580
  %v2357 = vadd.f32 %v2312, %v582
  %v2358 = vadd.f32 %v2317, %v584
  %v2359 = vadd.f32 %v2320, %v586
  %v2360 = vadd.f32 %v2325, %v588
  %v2361 = vadd.f32 %v2328, %v590
  %v2362 = vadd.f32 %v2333, %v592
  %v2363 = vadd.f32 %v2336, %v594
  %v2364 = vadd.f32 %v2341, %v596
  %v2365 = vadd.f32 %v2344, %v598
  %v2366 = vadd.f32 %v2349, %v1193
  %v2367 = vmax.f32 %v2354, 0.0
  %v2368 = vmax.f32 %v2355, 0.0
  %v2369 = vmax.f32 %v2356, 0.0
  %v2370 = vmax.f32 %v2357, 0.0
  %v2371 = vmax.f32 %v2358, 0.0
  %v2372 = vmax.f32 %v2359, 0.0
  %v2373 = vmax.f32 %v2360, 0.0
  %v2374 = vmax.f32 %v2361, 0.0
  %v2375 = vmax.f32 %v2362, 0.0
  %v2376 = vmax.f32 %v2363, 0.0
  %v2377 = vmax.f32 %v2364, 0.0
  %v2378 = vmax.f32 %v2365, 0.0
  %v2379 = vmax.f32 %v2366, 0.0
  %2380 = vst [vmem:[%s11] sm:$0xff] %v2367
  %2381 = vst [vmem:[%s11 + $0x8] sm:$0xff] %v2368
  %2382 = vst [vmem:[%s11 + $0x10] sm:$0xff] %v2369
  %2383 = vst [vmem:[%s11 + $0x18] sm:$0xff] %v2370
  %2384 = vst [vmem:[%s11 + $0x20] sm:$0xff] %v2371
  %2385 = vst [vmem:[%s11 + $0x28] sm:$0xff] %v2372
  %2386 = vst [vmem:[%s11 + $0x30] sm:$0xff] %v2373
  %2387 = vst [vmem:[%s11 + $0x38] sm:$0xff] %v2374
  %2388 = vst [vmem:[%s11 + $0x40] sm:$0xff] %v2375
  %2389 = vst [vmem:[%s11 + $0x48] sm:$0xff] %v2376
  %2390 = vst [vmem:[%s11 + $0x50] sm:$0xff] %v2377
  %2391 = vst [vmem:[%s11 + $0x58] sm:$0xff] %v2378
  %2392 = vst [vmem:[%s11 + $0x60] sm:$0xff] %v2379
  %v2393 = vld [vmem:[%s10] sm:$0xff]
  %vm2394 = vcmask 850944
  %v2396 = vsel %vm2394, %v2393, 0
  %2398 = vmatprep.subr.mxu0 0.0
  %2399 = vmatpush1.msra.mxu0 %v2367
  %2400 = vmatprep.subr.mxu0 0.0
  %2401 = vmatpush1.msra.mxu0 %v2368
  %2402 = vmatprep.subr.mxu0 0.0
  %2403 = vmatpush1.msra.mxu0 %v2369
  %2404 = vmatprep.subr.mxu0 0.0
  %2405 = vmatpush1.msra.mxu0 %v2370
  %2406 = vmatprep.subr.mxu0 0.0
  %2407 = vmatpush1.msra.mxu0 %v2371
  %2408 = vmatprep.subr.mxu0 0.0
  %2409 = vmatpush1.msra.mxu0 %v2372
  %2410 = vmatprep.subr.mxu0 0.0
  %2411 = vmatpush1.msra.mxu0 %v2373
  %2412 = vmatprep.subr.mxu0 0.0
  %2413 = vmatpush1.msra.mxu0 %v2374
  %2414 = vmatprep.subr.mxu0 0.0
  %2415 = vmatpush1.msra.mxu0 %v2375
  %2416 = vmatprep.subr.mxu0 0.0
  %2417 = vmatpush1.msra.mxu0 %v2376
  %2418 = vmatprep.subr.mxu0 0.0
  %2419 = vmatpush1.msra.mxu0 %v2377
  %2420 = vmatprep.subr.mxu0 0.0
  %2421 = vmatpush1.msra.mxu0 %v2378
  %2422 = vmatprep.subr.mxu0 0.0
  %2423 = vmatpush1.msra.mxu0 %v2379
  %2424 = vmatprep.subr.mxu0 0.0
  %2425 = vmatpush1.msra.mxu0 0.0
  %2426 = vmatprep.subr.mxu0 0.0
  %2427 = vmatpush1.msra.mxu0 0.0
  %2428 = vmatprep.subr.mxu0 0.0
  %2429 = vmatpush1.msra.mxu0 0.0
  %2430 = vmatprep.subr.mxu0 0.0
  %2431 = vmatpush1.msra.mxu0 0.0
  %2432 = vmatprep.subr.mxu0 0.0
  %2433 = vmatpush1.msra.mxu0 0.0
  %2434 = vmatprep.subr.mxu0 0.0
  %2435 = vmatpush1.msra.mxu0 0.0
  %2436 = vmatprep.subr.mxu0 0.0
  %2437 = vmatpush1.msra.mxu0 0.0
  %2438 = vmatprep.subr.mxu0 0.0
  %2439 = vmatpush1.msra.mxu0 0.0
  %2440 = vmatprep.subr.mxu0 0.0
  %2441 = vmatpush1.msra.mxu0 0.0
  %2442 = vmatprep.subr.mxu0 0.0
  %2443 = vmatpush1.msra.mxu0 0.0
  %2444 = vmatprep.subr.mxu0 0.0
  %2445 = vmatpush1.msra.mxu0 0.0
  %2446 = vmatprep.subr.mxu0 0.0
  %2447 = vmatpush1.msra.mxu0 0.0
  %2448 = vmatprep.subr.mxu0 0.0
  %2449 = vmatpush1.msra.mxu0 0.0
  %2450 = vmatprep.subr.mxu0 0.0
  %2451 = vmatpush1.msra.mxu0 0.0
  %2452 = vmatprep.subr.mxu0 0.0
  %2453 = vmatpush1.msra.mxu0 0.0
  %2454 = vmatprep.subr.mxu0 0.0
  %2455 = vmatpush1.msra.mxu0 0.0
  %2456 = vmatprep.subr.mxu0 0.0
  %2457 = vmatpush1.msra.mxu0 0.0
  %2458 = vmatprep.subr.mxu0 0.0
  %2459 = vmatpush1.msra.mxu0 0.0
  %2460 = vmatprep.subr.mxu0 0.0
  %2461 = vmatpush1.msra.mxu0 0.0
  %2462 = vmatprep.mubr.f32.mxu0 0.0
  %2463 = vmatmul.mubr.f32.gmra.mrb[0].mxu0 %v2396
  %v2464 = vpop.f32.mrb[0].mxu0
  %v2465 = vadd.f32 0.0, %v2464
  %v2466 = vpop.f32.mrb[0].mxu0
  %2467 = vdwg.mxu0
  %2468 = vst [vmem:[%s12] sm:$0xff] %v2465
  // Predicated region
  $region46: #{attentive_cnn_forward.1} parent=0 // pred_check
    _
  $region47: #{attentive_cnn_forward.1} parent=0 // pred_check_branch
    %2470 = sbr.rel (0) target = $region49
  $region48: #{attentive_cnn_forward.1} parent=0 // pred_region
    _
  $region49: #{attentive_cnn_forward.1} parent=0 // pred_fallthru
    _
  // Predicated region
  $region50: #{attentive_cnn_forward.1} parent=0 // pred_check
    _
  $region51: #{attentive_cnn_forward.1} parent=0 // pred_check_branch
    %2472 = sbr.rel (0) target = $region53
  $region52: #{attentive_cnn_forward.1} parent=0 // pred_region
    _
  $region53: #{attentive_cnn_forward.1} parent=0 // pred_fallthru
    _
  // Predicated region
  $region54: #{attentive_cnn_forward.1} parent=0 // pred_check
    _
  $region55: #{attentive_cnn_forward.1} parent=0 // pred_check_branch
    %2474 = sbr.rel (0) target = $region57
  $region56: #{attentive_cnn_forward.1} parent=0 // pred_region
    _
  $region57: #{attentive_cnn_forward.1} parent=0 // pred_fallthru
    _
  // Predicated region
  $region58: #{attentive_cnn_forward.1} parent=0 // pred_check
    _
  $region59: #{attentive_cnn_forward.1} parent=0 // pred_check_branch
    %2476 = sbr.rel (0) target = $region61
  $region60: #{attentive_cnn_forward.1} parent=0 // pred_region
    _
  $region61: #{attentive_cnn_forward.1} parent=0 // pred_fallthru
    _

</llo_original>
